<compile_context>
chip_gen: v6e
topology: v6e:2x2x1
jax: 0.10.0
libtpu: 0.0.40
codegen_flags: <defaults>
</compile_context>

<pallas_src>
import jax
import jax.numpy as jnp
from jax.experimental import pallas as pl
from jax.experimental.pallas import tpu as pltpu

# --- Problem sizes implied by the PyTorch module (Pendulum-v1) ---------------
STATE_DIM = 3        # env.observation_space.shape[0]
ACTION_DIM = 1       # env.action_space.shape[0]
MAX_ACTION = 2.0     # float(env.action_space.high[0])
H1, H2 = 400, 300    # fc1 / fc2 widths


def _pad_to(n, m):
    return ((n + m - 1) // m) * m


# --- Padded (TPU-tile-friendly) sizes ----------------------------------------
S_PAD  = _pad_to(STATE_DIM, 8)      # 8
H1_PAD = _pad_to(H1, 128)           # 512
H2_PAD = _pad_to(H2, 128)           # 384


def actor_kernel(x_ref, w1_ref, b1_ref, w2_ref, b2_ref, w3_ref, b3_ref, o_ref):
    """Fused 3-layer MLP in feature-major layout (batch lives in lanes)."""
    x = x_ref[...]                 # (S_PAD, tb) f32 — only rows [0, STATE_DIM) are real
    w1 = w1_ref[...]               # (H1_PAD, S_PAD) f32

    # fc1 on the VPU: STATE_DIM outer-product FMAs (K=3 would waste the MXU).
    acc = w1[:, 0:1] * x[0:1, :]
    for k in range(1, STATE_DIM):
        acc = acc + w1[:, k:k + 1] * x[k:k + 1, :]
    h1 = jnp.maximum(acc + b1_ref[...], 0.0)               # (H1_PAD, tb) f32

    # fc2 on the MXU: bf16 x bf16 -> f32 accumulate (native MXU path, no cast of w2).
    h2 = jnp.dot(w2_ref[...], h1.astype(jnp.bfloat16),
                 preferred_element_type=jnp.float32) + b2_ref[...]
    h2 = jnp.maximum(h2, 0.0)                               # (H2_PAD, tb) f32

    # fc3 (single output unit): VPU multiply + sublane reduce -> lane-dense row.
    h3 = jnp.sum(h2 * w3_ref[...], axis=0, keepdims=True) + b3_ref[...]   # (1, tb)
    o_ref[...] = jnp.tanh(h3) * MAX_ACTION


def pad_params(params):
    """Pad / transpose / convert parameters ONCE (outside the per-call hot path).

    w2 is stored bf16 (feeds the MXU directly); everything touched by the VPU
    (w1, biases, w3) stays f32.
    """
    w1, b1, w2, b2, w3, b3 = params
    w1_p = jnp.zeros((H1_PAD, S_PAD), jnp.float32).at[:H1, :STATE_DIM].set(w1.T)
    b1_p = jnp.zeros((H1_PAD, 1), jnp.float32).at[:H1, 0].set(b1)
    w2_p = (jnp.zeros((H2_PAD, H1_PAD), jnp.bfloat16)
            .at[:H2, :H1].set(w2.T.astype(jnp.bfloat16)))
    b2_p = jnp.zeros((H2_PAD, 1), jnp.float32).at[:H2, 0].set(b2)
    w3_p = jnp.zeros((H2_PAD, 1), jnp.float32).at[:H2, 0].set(w3[:, 0])
    b3_p = jnp.reshape(b3.astype(jnp.float32), (1, 1))
    return (w1_p, b1_p, w2_p, b2_p, w3_p, b3_p)


def actor_forward(state, padded_params, *, block_batch=1024):
    """state: [batch, STATE_DIM] f32. Returns [batch, ACTION_DIM] f32."""
    w1_p, b1_p, w2_p, b2_p, w3_p, b3_p = padded_params
    batch = state.shape[0]

    block_batch = max(128, _pad_to(block_batch, 128))   # lane-aligned cap
    batch8 = _pad_to(max(batch, 8), 8)
    if batch8 <= 128:
        tb = batch8                                      # tiny batch: one block
    else:
        # >= 2 lane-aligned blocks so both v7x TensorCores get work; cap at block_batch.
        tb = min(block_batch, _pad_to(-(-batch8 // 2), 128))
    b_pad = _pad_to(batch8, tb)
    n_blocks = b_pad // tb

    # Only the activation is padded/transposed per call (cheap: [8, b_pad] f32).
    x_p = jnp.zeros((S_PAD, b_pad), jnp.float32).at[:STATE_DIM, :batch].set(state.T)

    out = pl.pallas_call(
        actor_kernel,
        out_shape=jax.ShapeDtypeStruct((1, b_pad), jnp.float32),
        grid=(n_blocks,),
        in_specs=[
            pl.BlockSpec((S_PAD, tb),      lambda i: (0, i)),   # x: batch-tiled (lanes)
            pl.BlockSpec((H1_PAD, S_PAD),  lambda i: (0, 0)),   # w1^T: resident
            pl.BlockSpec((H1_PAD, 1),      lambda i: (0, 0)),   # b1
            pl.BlockSpec((H2_PAD, H1_PAD), lambda i: (0, 0)),   # w2^T (bf16): resident
            pl.BlockSpec((H2_PAD, 1),      lambda i: (0, 0)),   # b2
            pl.BlockSpec((H2_PAD, 1),      lambda i: (0, 0)),   # w3 column
            pl.BlockSpec((1, 1),           lambda i: (0, 0)),   # b3
        ],
        out_specs=pl.BlockSpec((1, tb), lambda i: (0, i)),      # lane-dense output row
        compiler_params=pltpu.CompilerParams(
            dimension_semantics=("parallel",),
            vmem_limit_bytes=32 * 1024 * 1024),
    )(x_p, w1_p, b1_p, w2_p, b2_p, w3_p, b3_p)

    return out[0, :batch].reshape(batch, ACTION_DIM)


def init_params(key):
    """Deterministic init mimicking nn.Linear's U(-1/sqrt(fan_in), 1/sqrt(fan_in))."""
    ks = jax.random.split(key, 6)

    def linear(kw, kb, fan_in, fan_out):
        bound = 1.0 / jnp.sqrt(fan_in)
        w = jax.random.uniform(kw, (fan_in, fan_out), jnp.float32, -bound, bound)
        b = jax.random.uniform(kb, (fan_out,), jnp.float32, -bound, bound)
        return w, b

    w1, b1 = linear(ks[0], ks[1], STATE_DIM, H1)
    w2, b2 = linear(ks[2], ks[3], H1, H2)
    w3, b3 = linear(ks[4], ks[5], H2, ACTION_DIM)
    return (w1, b1, w2, b2, w3, b3)


def actor_ref(state, params):
    """Pure-JAX f32 reference (highest precision) for a loose sanity check."""
    w1, b1, w2, b2, w3, b3 = params
    hp = jax.lax.Precision.HIGHEST
    a = jnp.maximum(jnp.dot(state, w1, precision=hp) + b1, 0.0)
    a = jnp.maximum(jnp.dot(a, w2, precision=hp) + b2, 0.0)
    return jnp.tanh(jnp.dot(a, w3, precision=hp) + b3) * MAX_ACTION


def actor_ref_mixed(state, params):
    """Reference matching the kernel's mixed precision (bf16 h1 / w2 into the MXU)."""
    w1, b1, w2, b2, w3, b3 = params
    hp = jax.lax.Precision.HIGHEST
    h1 = jnp.maximum(jnp.dot(state, w1, precision=hp) + b1, 0.0).astype(jnp.bfloat16)
    h2 = jnp.dot(h1, w2.astype(jnp.bfloat16),
                 preferred_element_type=jnp.float32) + b2
    h2 = jnp.maximum(h2, 0.0)
    return jnp.tanh(jnp.dot(h2, w3, precision=hp) + b3) * MAX_ACTION


if __name__ == "__main__":
    key = jax.random.PRNGKey(0)
    k_param, k_state = jax.random.split(key)
    params = init_params(k_param)
    padded = pad_params(params)          # one-time padding (not in hot path)

    # --- small inference-style batch (single grid block) ----------------------
    batch = 2
    state = jax.random.normal(k_state, (batch, STATE_DIM), jnp.float32)
    out = jax.block_until_ready(actor_forward(state, padded))
    assert out.shape == (batch, ACTION_DIM)
    assert jnp.allclose(out, actor_ref_mixed(state, params), atol=2e-3, rtol=2e-3)
    assert jnp.allclose(out, actor_ref(state, params), atol=1e-1)

    # --- larger batch exercising the 2-block "parallel" grid ------------------
    batch2 = 300
    state2 = jax.random.normal(jax.random.PRNGKey(1), (batch2, STATE_DIM), jnp.float32)
    out2 = jax.block_until_ready(actor_forward(state2, padded))
    assert out2.shape == (batch2, ACTION_DIM)
    assert jnp.allclose(out2, actor_ref_mixed(state2, params), atol=2e-3, rtol=2e-3)
    assert jnp.allclose(out2, actor_ref(state2, params), atol=1e-1)

    print("KERNEL_OK")
</pallas_src>

<mosaic_0001>
module attributes {stable_mosaic.version = 11 : i64} {
  func.func @actor_kernel(%arg0: i32, %arg1: memref<8x8xf32, #tpu.memory_space<vmem>>, %arg2: memref<512x8xf32, #tpu.memory_space<vmem>>, %arg3: memref<512x1xf32, #tpu.memory_space<vmem>>, %arg4: memref<384x512xbf16, #tpu.memory_space<vmem>>, %arg5: memref<384x1xf32, #tpu.memory_space<vmem>>, %arg6: memref<384x1xf32, #tpu.memory_space<vmem>>, %arg7: memref<1x1xf32, #tpu.memory_space<vmem>>, %arg8: memref<1x8xf32, #tpu.memory_space<vmem>>) attributes {dimension_semantics = [#tpu.dimension_semantics<parallel>], iteration_bounds = array<i64: 1>, scalar_prefetch = 0 : i64, scratch_operands = 0 : i64, tpu.core_type = #tpu.core_type<tc>, window_params = [{transform_indices = @transform_0, window_bounds = array<i64: 8, 8>}, {pipeline_mode = #tpu.pipeline_mode<synchronous>, transform_indices = @transform_1, window_bounds = array<i64: 512, 8>}, {pipeline_mode = #tpu.pipeline_mode<synchronous>, transform_indices = @transform_2, window_bounds = array<i64: 512, 1>}, {pipeline_mode = #tpu.pipeline_mode<synchronous>, transform_indices = @transform_3, window_bounds = array<i64: 384, 512>}, {pipeline_mode = #tpu.pipeline_mode<synchronous>, transform_indices = @transform_4, window_bounds = array<i64: 384, 1>}, {pipeline_mode = #tpu.pipeline_mode<synchronous>, transform_indices = @transform_5, window_bounds = array<i64: 384, 1>}, {pipeline_mode = #tpu.pipeline_mode<synchronous>, transform_indices = @transform_6, window_bounds = array<i64: 1, 1>}, {transform_indices = @transform_7, window_bounds = array<i64: 1, 8>}]} {
    %c0 = arith.constant 0 : index
    %c0_0 = arith.constant 0 : index
    %0 = vector.load %arg1[%c0, %c0_0] : memref<8x8xf32, #tpu.memory_space<vmem>>, vector<8x8xf32>
    %c0_1 = arith.constant 0 : index
    %c0_2 = arith.constant 0 : index
    %1 = vector.load %arg2[%c0_1, %c0_2] : memref<512x8xf32, #tpu.memory_space<vmem>>, vector<512x8xf32>
    %2 = vector.extract_strided_slice %1 {offsets = [0, 0], sizes = [512, 1], strides = [1, 1]} : vector<512x8xf32> to vector<512x1xf32>
    %3 = vector.extract_strided_slice %0 {offsets = [0, 0], sizes = [1, 8], strides = [1, 1]} : vector<8x8xf32> to vector<1x8xf32>
    %4 = vector.broadcast %2 : vector<512x1xf32> to vector<512x8xf32>
    %5 = vector.broadcast %3 : vector<1x8xf32> to vector<512x8xf32>
    %6 = arith.mulf %4, %5 : vector<512x8xf32>
    %7 = vector.extract_strided_slice %1 {offsets = [0, 1], sizes = [512, 1], strides = [1, 1]} : vector<512x8xf32> to vector<512x1xf32>
    %8 = vector.extract_strided_slice %0 {offsets = [1, 0], sizes = [1, 8], strides = [1, 1]} : vector<8x8xf32> to vector<1x8xf32>
    %9 = vector.broadcast %7 : vector<512x1xf32> to vector<512x8xf32>
    %10 = vector.broadcast %8 : vector<1x8xf32> to vector<512x8xf32>
    %11 = arith.mulf %9, %10 : vector<512x8xf32>
    %12 = arith.addf %6, %11 : vector<512x8xf32>
    %13 = vector.extract_strided_slice %1 {offsets = [0, 2], sizes = [512, 1], strides = [1, 1]} : vector<512x8xf32> to vector<512x1xf32>
    %14 = vector.extract_strided_slice %0 {offsets = [2, 0], sizes = [1, 8], strides = [1, 1]} : vector<8x8xf32> to vector<1x8xf32>
    %15 = vector.broadcast %13 : vector<512x1xf32> to vector<512x8xf32>
    %16 = vector.broadcast %14 : vector<1x8xf32> to vector<512x8xf32>
    %17 = arith.mulf %15, %16 : vector<512x8xf32>
    %18 = arith.addf %12, %17 : vector<512x8xf32>
    %c0_3 = arith.constant 0 : index
    %c0_4 = arith.constant 0 : index
    %19 = vector.load %arg3[%c0_3, %c0_4] : memref<512x1xf32, #tpu.memory_space<vmem>>, vector<512x1xf32>
    %20 = vector.broadcast %19 : vector<512x1xf32> to vector<512x8xf32>
    %21 = arith.addf %18, %20 : vector<512x8xf32>
    %cst = arith.constant 0.000000e+00 : f32
    %22 = vector.broadcast %cst : f32 to vector<512x8xf32>
    %23 = arith.maximumf %21, %22 : vector<512x8xf32>
    %c0_5 = arith.constant 0 : index
    %c0_6 = arith.constant 0 : index
    %24 = vector.load %arg4[%c0_5, %c0_6] : memref<384x512xbf16, #tpu.memory_space<vmem>>, vector<384x512xbf16>
    %25 = arith.truncf %23 : vector<512x8xf32> to vector<512x8xbf16>
    %cst_7 = arith.constant dense<0.000000e+00> : vector<384x8xf32>
    %26 = tpu.matmul %24, %25, %cst_7 {dimension_numbers = #tpu.dot_dimension_numbers<[1], [0], [0], [1], [0, 0, 1, 1], [], []>} : vector<384x512xbf16>, vector<512x8xbf16>, vector<384x8xf32> -> vector<384x8xf32>
    %c0_8 = arith.constant 0 : index
    %c0_9 = arith.constant 0 : index
    %27 = vector.load %arg5[%c0_8, %c0_9] : memref<384x1xf32, #tpu.memory_space<vmem>>, vector<384x1xf32>
    %28 = vector.broadcast %27 : vector<384x1xf32> to vector<384x8xf32>
    %29 = arith.addf %26, %28 : vector<384x8xf32>
    %cst_10 = arith.constant 0.000000e+00 : f32
    %30 = vector.broadcast %cst_10 : f32 to vector<384x8xf32>
    %31 = arith.maximumf %29, %30 : vector<384x8xf32>
    %c0_11 = arith.constant 0 : index
    %c0_12 = arith.constant 0 : index
    %32 = vector.load %arg6[%c0_11, %c0_12] : memref<384x1xf32, #tpu.memory_space<vmem>>, vector<384x1xf32>
    %33 = vector.broadcast %32 : vector<384x1xf32> to vector<384x8xf32>
    %34 = arith.mulf %31, %33 : vector<384x8xf32>
    %cst_13 = arith.constant dense<0.000000e+00> : vector<8xf32>
    %35 = vector.multi_reduction <add>, %34, %cst_13 [0] : vector<384x8xf32> to vector<8xf32>
    %36 = vector.shape_cast %35 : vector<8xf32> to vector<1x8xf32>
    %c0_14 = arith.constant 0 : index
    %c0_15 = arith.constant 0 : index
    %37 = vector.load %arg7[%c0_14, %c0_15] : memref<1x1xf32, #tpu.memory_space<vmem>>, vector<1x1xf32>
    %38 = vector.broadcast %37 : vector<1x1xf32> to vector<1x8xf32>
    %39 = arith.addf %36, %38 : vector<1x8xf32>
    %40 = math.tanh %39 : vector<1x8xf32>
    %cst_16 = arith.constant 2.000000e+00 : f32
    %41 = vector.broadcast %cst_16 : f32 to vector<1x8xf32>
    %42 = arith.mulf %40, %41 : vector<1x8xf32>
    %c0_17 = arith.constant 0 : index
    %c0_18 = arith.constant 0 : index
    %43 = vector.load %arg8[%c0_17, %c0_18] : memref<1x8xf32, #tpu.memory_space<vmem>>, vector<1x8xf32>
    tpu.vector_store %arg8[%c0_17, %c0_18], %42 {strides = array<i32>} : memref<1x8xf32, #tpu.memory_space<vmem>>, vector<1x8xf32>,
    return
  }
  func.func @transform_0(%arg0: i32) -> (i32, i32) {
    %c0_i32 = arith.constant 0 : i32
    %c0_i32_0 = arith.constant 0 : i32
    return %c0_i32, %arg0 : i32, i32
  }
  func.func @transform_1(%arg0: i32) -> (i32, i32) {
    %c0_i32 = arith.constant 0 : i32
    %c0_i32_0 = arith.constant 0 : i32
    %c0_i32_1 = arith.constant 0 : i32
    return %c0_i32, %c0_i32_0 : i32, i32
  }
  func.func @transform_2(%arg0: i32) -> (i32, i32) {
    %c0_i32 = arith.constant 0 : i32
    %c0_i32_0 = arith.constant 0 : i32
    %c0_i32_1 = arith.constant 0 : i32
    return %c0_i32, %c0_i32_0 : i32, i32
  }
  func.func @transform_3(%arg0: i32) -> (i32, i32) {
    %c0_i32 = arith.constant 0 : i32
    %c0_i32_0 = arith.constant 0 : i32
    %c0_i32_1 = arith.constant 0 : i32
    return %c0_i32, %c0_i32_0 : i32, i32
  }
  func.func @transform_4(%arg0: i32) -> (i32, i32) {
    %c0_i32 = arith.constant 0 : i32
    %c0_i32_0 = arith.constant 0 : i32
    %c0_i32_1 = arith.constant 0 : i32
    return %c0_i32, %c0_i32_0 : i32, i32
  }
  func.func @transform_5(%arg0: i32) -> (i32, i32) {
    %c0_i32 = arith.constant 0 : i32
    %c0_i32_0 = arith.constant 0 : i32
    %c0_i32_1 = arith.constant 0 : i32
    return %c0_i32, %c0_i32_0 : i32, i32
  }
  func.func @transform_6(%arg0: i32) -> (i32, i32) {
    %c0_i32 = arith.constant 0 : i32
    %c0_i32_0 = arith.constant 0 : i32
    %c0_i32_1 = arith.constant 0 : i32
    return %c0_i32, %c0_i32_0 : i32, i32
  }
  func.func @transform_7(%arg0: i32) -> (i32, i32) {
    %c0_i32 = arith.constant 0 : i32
    %c0_i32_0 = arith.constant 0 : i32
    return %c0_i32, %arg0 : i32, i32
  }
}

</mosaic_0001>

<llo_original>
// kernel: tpu_custom_call.1
$region0: #{tpu_custom_call.1}
  #allocation0 [shape = 'u32[]', space=smem, size = 0x4, offset = 0x4, fixed_abs, tag = 'smem constant byte address 0x4 - core index']
  #allocation1 [shape = 'u32[144,128]{1,0:T(1,128)}', space=vmem, size = 0x12000, scoped, tag = 'internal scratch']
  #allocation2 [shape = 'f32[1,1]{1,0:T(1,128)S(1)}', space=vmem, size = 0x200, scoped, tag = 'scoped memory for tpu_custom_call.1']
  %s0 = inlined_call_operand.vmem [shape: f32[8,8], index: 0, kind: input, shape index: {}]
  %s1 = inlined_call_operand.vmem [shape: f32[512,8], index: 1, kind: input, shape index: {}]
  %s2 = inlined_call_operand.vmem [shape: f32[512,1], index: 2, kind: input, shape index: {}]
  %s3 = inlined_call_operand.vmem [shape: bf16[384,512], index: 3, kind: input, shape index: {}]
  %s4 = inlined_call_operand.vmem [shape: f32[384,1], index: 4, kind: input, shape index: {}]
  %s5 = inlined_call_operand.vmem [shape: f32[384,1], index: 5, kind: input, shape index: {}]
  %s6 = inlined_call_operand.<no memory space> [shape: f32[1,1], index: 6, kind: input, shape index: {}]
  %s7 = inlined_call_operand.hbm [shape: f32[1,8], index: 7, kind: output, shape index: {}]
  %s8 = sld [smem:[#allocation0]]
  $region38: #{tpu_custom_call.1} parent=0
    _
  %s10 = ssub.s32 1, %s8
  %s11 = scalar_select 0, %s10, %s8
  %v12 = vstv %s6
  %13 = vst [vmem:[#allocation2] sm:$0x1] %v12
  $region1: #{tpu_custom_call.1} parent=0
    #allocation3 [shape = 'u8[512]{0}', space=vmem, size = 0x400, scoped, tag = 'output window, operand 0, single buffered']
    #allocation4 [shape = 's32[1]{0}', space=sflag, size = 0x4, scoped, tag = 'scoped memory for tpu_custom_call.1']
    %14 = vsyncpa [#allocation4], 0
    // Predicated region
    $region2: #{tpu_custom_call.1} parent=1 // pred_check
      _
    $region3: #{tpu_custom_call.1} parent=1 // pred_check_branch
      %16 = sbr.rel (0) target = $region5
    $region4: #{tpu_custom_call.1} parent=1 // pred_region
      _
    $region5: #{tpu_custom_call.1} parent=1 // pred_fallthru
      _
    // Predicated region
    $region6: #{tpu_custom_call.1} parent=1 // pred_check
      _
    $region7: #{tpu_custom_call.1} parent=1 // pred_check_branch
      %18 = sbr.rel (0) target = $region9
    $region8: #{tpu_custom_call.1} parent=1 // pred_region
      _
    $region9: #{tpu_custom_call.1} parent=1 // pred_fallthru
      _
    // Predicated region
    $region10: #{tpu_custom_call.1} parent=1 // pred_check
      _
    $region11: #{tpu_custom_call.1} parent=1 // pred_check_branch
      %20 = sbr.rel (0) target = $region13
    $region12: #{tpu_custom_call.1} parent=1 // pred_region
      _
    $region13: #{tpu_custom_call.1} parent=1 // pred_fallthru
      _
    // Predicated region
    $region14: #{tpu_custom_call.1} parent=1 // pred_check
      _
    $region15: #{tpu_custom_call.1} parent=1 // pred_check_branch
      %22 = sbr.rel (0) target = $region17
    $region16: #{tpu_custom_call.1} parent=1 // pred_region
      _
    $region17: #{tpu_custom_call.1} parent=1 // pred_fallthru
      _
    // Predicated region
    $region18: #{tpu_custom_call.1} parent=1 // pred_check
      _
    $region19: #{tpu_custom_call.1} parent=1 // pred_check_branch
      %24 = sbr.rel (0) target = $region21
    $region20: #{tpu_custom_call.1} parent=1 // pred_region
      _
    $region21: #{tpu_custom_call.1} parent=1 // pred_fallthru
      _
    // Predicated region
    $region22: #{tpu_custom_call.1} parent=1 // pred_check
      _
    $region23: #{tpu_custom_call.1} parent=1 // pred_check_branch
      %26 = sbr.rel (0) target = $region25
    $region24: #{tpu_custom_call.1} parent=1 // pred_region
      _
    $region25: #{tpu_custom_call.1} parent=1 // pred_fallthru
      _
    // Predicated region
    $region26: #{tpu_custom_call.1} parent=1 // pred_check
      _
    $region27: #{tpu_custom_call.1} parent=1 // pred_check_branch
      %28 = sbr.rel (0) target = $region29
    $region28: #{tpu_custom_call.1} parent=1 // pred_region
      _
    $region29: #{tpu_custom_call.1} parent=1 // pred_fallthru
      _
    %v30 = vld [vmem:[%s0] sm:$0xff]
    %v31 = vld [vmem:[%s1] sm:$0xff]
    %v32 = vld [vmem:[%s1 + $0x8] sm:$0xff]
    %v33 = vld [vmem:[%s1 + $0x10] sm:$0xff]
    %v34 = vld [vmem:[%s1 + $0x18] sm:$0xff]
    %v35 = vld [vmem:[%s1 + $0x20] sm:$0xff]
    %v36 = vld [vmem:[%s1 + $0x28] sm:$0xff]
    %v37 = vld [vmem:[%s1 + $0x30] sm:$0xff]
    %v38 = vld [vmem:[%s1 + $0x38] sm:$0xff]
    %v39 = vld [vmem:[%s1 + $0x40] sm:$0xff]
    %v40 = vld [vmem:[%s1 + $0x48] sm:$0xff]
    %v41 = vld [vmem:[%s1 + $0x50] sm:$0xff]
    %v42 = vld [vmem:[%s1 + $0x58] sm:$0xff]
    %v43 = vld [vmem:[%s1 + $0x60] sm:$0xff]
    %v44 = vld [vmem:[%s1 + $0x68] sm:$0xff]
    %v45 = vld [vmem:[%s1 + $0x70] sm:$0xff]
    %v46 = vld [vmem:[%s1 + $0x78] sm:$0xff]
    %v47 = vld [vmem:[%s1 + $0x80] sm:$0xff]
    %v48 = vld [vmem:[%s1 + $0x88] sm:$0xff]
    %v49 = vld [vmem:[%s1 + $0x90] sm:$0xff]
    %v50 = vld [vmem:[%s1 + $0x98] sm:$0xff]
    %v51 = vld [vmem:[%s1 + $0xa0] sm:$0xff]
    %v52 = vld [vmem:[%s1 + $0xa8] sm:$0xff]
    %v53 = vld [vmem:[%s1 + $0xb0] sm:$0xff]
    %v54 = vld [vmem:[%s1 + $0xb8] sm:$0xff]
    %v55 = vld [vmem:[%s1 + $0xc0] sm:$0xff]
    %v56 = vld [vmem:[%s1 + $0xc8] sm:$0xff]
    %v57 = vld [vmem:[%s1 + $0xd0] sm:$0xff]
    %v58 = vld [vmem:[%s1 + $0xd8] sm:$0xff]
    %v59 = vld [vmem:[%s1 + $0xe0] sm:$0xff]
    %v60 = vld [vmem:[%s1 + $0xe8] sm:$0xff]
    %v61 = vld [vmem:[%s1 + $0xf0] sm:$0xff]
    %v62 = vld [vmem:[%s1 + $0xf8] sm:$0xff]
    %v63 = vld [vmem:[%s1 + $0x100] sm:$0xff]
    %v64 = vld [vmem:[%s1 + $0x108] sm:$0xff]
    %v65 = vld [vmem:[%s1 + $0x110] sm:$0xff]
    %v66 = vld [vmem:[%s1 + $0x118] sm:$0xff]
    %v67 = vld [vmem:[%s1 + $0x120] sm:$0xff]
    %v68 = vld [vmem:[%s1 + $0x128] sm:$0xff]
    %v69 = vld [vmem:[%s1 + $0x130] sm:$0xff]
    %v70 = vld [vmem:[%s1 + $0x138] sm:$0xff]
    %v71 = vld [vmem:[%s1 + $0x140] sm:$0xff]
    %v72 = vld [vmem:[%s1 + $0x148] sm:$0xff]
    %v73 = vld [vmem:[%s1 + $0x150] sm:$0xff]
    %v74 = vld [vmem:[%s1 + $0x158] sm:$0xff]
    %v75 = vld [vmem:[%s1 + $0x160] sm:$0xff]
    %v76 = vld [vmem:[%s1 + $0x168] sm:$0xff]
    %v77 = vld [vmem:[%s1 + $0x170] sm:$0xff]
    %v78 = vld [vmem:[%s1 + $0x178] sm:$0xff]
    %v79 = vld [vmem:[%s1 + $0x180] sm:$0xff]
    %v80 = vld [vmem:[%s1 + $0x188] sm:$0xff]
    %v81 = vld [vmem:[%s1 + $0x190] sm:$0xff]
    %v82 = vld [vmem:[%s1 + $0x198] sm:$0xff]
    %v83 = vld [vmem:[%s1 + $0x1a0] sm:$0xff]
    %v84 = vld [vmem:[%s1 + $0x1a8] sm:$0xff]
    %v85 = vld [vmem:[%s1 + $0x1b0] sm:$0xff]
    %v86 = vld [vmem:[%s1 + $0x1b8] sm:$0xff]
    %v87 = vld [vmem:[%s1 + $0x1c0] sm:$0xff]
    %v88 = vld [vmem:[%s1 + $0x1c8] sm:$0xff]
    %v89 = vld [vmem:[%s1 + $0x1d0] sm:$0xff]
    %v90 = vld [vmem:[%s1 + $0x1d8] sm:$0xff]
    %v91 = vld [vmem:[%s1 + $0x1e0] sm:$0xff]
    %v92 = vld [vmem:[%s1 + $0x1e8] sm:$0xff]
    %v93 = vld [vmem:[%s1 + $0x1f0] sm:$0xff]
    %v94 = vld [vmem:[%s1 + $0x1f8] sm:$0xff]
    %96 = vset.pattern.permute.xlu0 0
    %97 = vperm.xlu0 %96, %v31
    %v98 = vpop.permute.xlu0 %97
    %101 = vset.pattern.permute.xlu0 0
    %102 = vperm.xlu0 %101, %v32
    %v103 = vpop.permute.xlu0 %102
    %106 = vset.pattern.permute.xlu0 0
    %107 = vperm.xlu0 %106, %v33
    %v108 = vpop.permute.xlu0 %107
    %111 = vset.pattern.permute.xlu0 0
    %112 = vperm.xlu0 %111, %v34
    %v113 = vpop.permute.xlu0 %112
    %116 = vset.pattern.permute.xlu0 0
    %117 = vperm.xlu0 %116, %v35
    %v118 = vpop.permute.xlu0 %117
    %121 = vset.pattern.permute.xlu0 0
    %122 = vperm.xlu0 %121, %v36
    %v123 = vpop.permute.xlu0 %122
    %126 = vset.pattern.permute.xlu0 0
    %127 = vperm.xlu0 %126, %v37
    %v128 = vpop.permute.xlu0 %127
    %131 = vset.pattern.permute.xlu0 0
    %132 = vperm.xlu0 %131, %v38
    %v133 = vpop.permute.xlu0 %132
    %136 = vset.pattern.permute.xlu0 0
    %137 = vperm.xlu0 %136, %v39
    %v138 = vpop.permute.xlu0 %137
    %141 = vset.pattern.permute.xlu0 0
    %142 = vperm.xlu0 %141, %v40
    %v143 = vpop.permute.xlu0 %142
    %146 = vset.pattern.permute.xlu0 0
    %147 = vperm.xlu0 %146, %v41
    %v148 = vpop.permute.xlu0 %147
    %151 = vset.pattern.permute.xlu0 0
    %152 = vperm.xlu0 %151, %v42
    %v153 = vpop.permute.xlu0 %152
    %156 = vset.pattern.permute.xlu0 0
    %157 = vperm.xlu0 %156, %v43
    %v158 = vpop.permute.xlu0 %157
    %161 = vset.pattern.permute.xlu0 0
    %162 = vperm.xlu0 %161, %v44
    %v163 = vpop.permute.xlu0 %162
    %166 = vset.pattern.permute.xlu0 0
    %167 = vperm.xlu0 %166, %v45
    %v168 = vpop.permute.xlu0 %167
    %171 = vset.pattern.permute.xlu0 0
    %172 = vperm.xlu0 %171, %v46
    %v173 = vpop.permute.xlu0 %172
    %176 = vset.pattern.permute.xlu0 0
    %177 = vperm.xlu0 %176, %v47
    %v178 = vpop.permute.xlu0 %177
    %181 = vset.pattern.permute.xlu0 0
    %182 = vperm.xlu0 %181, %v48
    %v183 = vpop.permute.xlu0 %182
    %186 = vset.pattern.permute.xlu0 0
    %187 = vperm.xlu0 %186, %v49
    %v188 = vpop.permute.xlu0 %187
    %191 = vset.pattern.permute.xlu0 0
    %192 = vperm.xlu0 %191, %v50
    %v193 = vpop.permute.xlu0 %192
    %196 = vset.pattern.permute.xlu0 0
    %197 = vperm.xlu0 %196, %v51
    %v198 = vpop.permute.xlu0 %197
    %201 = vset.pattern.permute.xlu0 0
    %202 = vperm.xlu0 %201, %v52
    %v203 = vpop.permute.xlu0 %202
    %206 = vset.pattern.permute.xlu0 0
    %207 = vperm.xlu0 %206, %v53
    %v208 = vpop.permute.xlu0 %207
    %211 = vset.pattern.permute.xlu0 0
    %212 = vperm.xlu0 %211, %v54
    %v213 = vpop.permute.xlu0 %212
    %216 = vset.pattern.permute.xlu0 0
    %217 = vperm.xlu0 %216, %v55
    %v218 = vpop.permute.xlu0 %217
    %221 = vset.pattern.permute.xlu0 0
    %222 = vperm.xlu0 %221, %v56
    %v223 = vpop.permute.xlu0 %222
    %226 = vset.pattern.permute.xlu0 0
    %227 = vperm.xlu0 %226, %v57
    %v228 = vpop.permute.xlu0 %227
    %231 = vset.pattern.permute.xlu0 0
    %232 = vperm.xlu0 %231, %v58
    %v233 = vpop.permute.xlu0 %232
    %236 = vset.pattern.permute.xlu0 0
    %237 = vperm.xlu0 %236, %v59
    %v238 = vpop.permute.xlu0 %237
    %241 = vset.pattern.permute.xlu0 0
    %242 = vperm.xlu0 %241, %v60
    %v243 = vpop.permute.xlu0 %242
    %246 = vset.pattern.permute.xlu0 0
    %247 = vperm.xlu0 %246, %v61
    %v248 = vpop.permute.xlu0 %247
    %251 = vset.pattern.permute.xlu0 0
    %252 = vperm.xlu0 %251, %v62
    %v253 = vpop.permute.xlu0 %252
    %256 = vset.pattern.permute.xlu0 0
    %257 = vperm.xlu0 %256, %v63
    %v258 = vpop.permute.xlu0 %257
    %261 = vset.pattern.permute.xlu0 0
    %262 = vperm.xlu0 %261, %v64
    %v263 = vpop.permute.xlu0 %262
    %266 = vset.pattern.permute.xlu0 0
    %267 = vperm.xlu0 %266, %v65
    %v268 = vpop.permute.xlu0 %267
    %271 = vset.pattern.permute.xlu0 0
    %272 = vperm.xlu0 %271, %v66
    %v273 = vpop.permute.xlu0 %272
    %276 = vset.pattern.permute.xlu0 0
    %277 = vperm.xlu0 %276, %v67
    %v278 = vpop.permute.xlu0 %277
    %281 = vset.pattern.permute.xlu0 0
    %282 = vperm.xlu0 %281, %v68
    %v283 = vpop.permute.xlu0 %282
    %286 = vset.pattern.permute.xlu0 0
    %287 = vperm.xlu0 %286, %v69
    %v288 = vpop.permute.xlu0 %287
    %291 = vset.pattern.permute.xlu0 0
    %292 = vperm.xlu0 %291, %v70
    %v293 = vpop.permute.xlu0 %292
    %296 = vset.pattern.permute.xlu0 0
    %297 = vperm.xlu0 %296, %v71
    %v298 = vpop.permute.xlu0 %297
    %301 = vset.pattern.permute.xlu0 0
    %302 = vperm.xlu0 %301, %v72
    %v303 = vpop.permute.xlu0 %302
    %306 = vset.pattern.permute.xlu0 0
    %307 = vperm.xlu0 %306, %v73
    %v308 = vpop.permute.xlu0 %307
    %311 = vset.pattern.permute.xlu0 0
    %312 = vperm.xlu0 %311, %v74
    %v313 = vpop.permute.xlu0 %312
    %316 = vset.pattern.permute.xlu0 0
    %317 = vperm.xlu0 %316, %v75
    %v318 = vpop.permute.xlu0 %317
    %321 = vset.pattern.permute.xlu0 0
    %322 = vperm.xlu0 %321, %v76
    %v323 = vpop.permute.xlu0 %322
    %326 = vset.pattern.permute.xlu0 0
    %327 = vperm.xlu0 %326, %v77
    %v328 = vpop.permute.xlu0 %327
    %331 = vset.pattern.permute.xlu0 0
    %332 = vperm.xlu0 %331, %v78
    %v333 = vpop.permute.xlu0 %332
    %336 = vset.pattern.permute.xlu0 0
    %337 = vperm.xlu0 %336, %v79
    %v338 = vpop.permute.xlu0 %337
    %341 = vset.pattern.permute.xlu0 0
    %342 = vperm.xlu0 %341, %v80
    %v343 = vpop.permute.xlu0 %342
    %346 = vset.pattern.permute.xlu0 0
    %347 = vperm.xlu0 %346, %v81
    %v348 = vpop.permute.xlu0 %347
    %351 = vset.pattern.permute.xlu0 0
    %352 = vperm.xlu0 %351, %v82
    %v353 = vpop.permute.xlu0 %352
    %356 = vset.pattern.permute.xlu0 0
    %357 = vperm.xlu0 %356, %v83
    %v358 = vpop.permute.xlu0 %357
    %361 = vset.pattern.permute.xlu0 0
    %362 = vperm.xlu0 %361, %v84
    %v363 = vpop.permute.xlu0 %362
    %366 = vset.pattern.permute.xlu0 0
    %367 = vperm.xlu0 %366, %v85
    %v368 = vpop.permute.xlu0 %367
    %371 = vset.pattern.permute.xlu0 0
    %372 = vperm.xlu0 %371, %v86
    %v373 = vpop.permute.xlu0 %372
    %376 = vset.pattern.permute.xlu0 0
    %377 = vperm.xlu0 %376, %v87
    %v378 = vpop.permute.xlu0 %377
    %381 = vset.pattern.permute.xlu0 0
    %382 = vperm.xlu0 %381, %v88
    %v383 = vpop.permute.xlu0 %382
    %386 = vset.pattern.permute.xlu0 0
    %387 = vperm.xlu0 %386, %v89
    %v388 = vpop.permute.xlu0 %387
    %391 = vset.pattern.permute.xlu0 0
    %392 = vperm.xlu0 %391, %v90
    %v393 = vpop.permute.xlu0 %392
    %396 = vset.pattern.permute.xlu0 0
    %397 = vperm.xlu0 %396, %v91
    %v398 = vpop.permute.xlu0 %397
    %401 = vset.pattern.permute.xlu0 0
    %402 = vperm.xlu0 %401, %v92
    %v403 = vpop.permute.xlu0 %402
    %406 = vset.pattern.permute.xlu0 0
    %407 = vperm.xlu0 %406, %v93
    %v408 = vpop.permute.xlu0 %407
    %411 = vset.pattern.permute.xlu0 0
    %412 = vperm.xlu0 %411, %v94
    %v413 = vpop.permute.xlu0 %412
    %v415 = vlaneseq
    %v416 = vshrl.u32 %v415, 7
    %v417 = vsub.s32 0, %v416
    %v418 = vrot.slane %v30, %v417
    %v419 = vmul.f32 %v98, %v418
    %v420 = vmul.f32 %v103, %v418
    %v421 = vmul.f32 %v108, %v418
    %v422 = vmul.f32 %v113, %v418
    %v423 = vmul.f32 %v118, %v418
    %v424 = vmul.f32 %v123, %v418
    %v425 = vmul.f32 %v128, %v418
    %v426 = vmul.f32 %v133, %v418
    %v427 = vmul.f32 %v138, %v418
    %v428 = vmul.f32 %v143, %v418
    %v429 = vmul.f32 %v148, %v418
    %v430 = vmul.f32 %v153, %v418
    %v431 = vmul.f32 %v158, %v418
    %v432 = vmul.f32 %v163, %v418
    %v433 = vmul.f32 %v168, %v418
    %v434 = vmul.f32 %v173, %v418
    %v435 = vmul.f32 %v178, %v418
    %v436 = vmul.f32 %v183, %v418
    %v437 = vmul.f32 %v188, %v418
    %v438 = vmul.f32 %v193, %v418
    %v439 = vmul.f32 %v198, %v418
    %v440 = vmul.f32 %v203, %v418
    %v441 = vmul.f32 %v208, %v418
    %v442 = vmul.f32 %v213, %v418
    %v443 = vmul.f32 %v218, %v418
    %v444 = vmul.f32 %v223, %v418
    %v445 = vmul.f32 %v228, %v418
    %v446 = vmul.f32 %v233, %v418
    %v447 = vmul.f32 %v238, %v418
    %v448 = vmul.f32 %v243, %v418
    %v449 = vmul.f32 %v248, %v418
    %v450 = vmul.f32 %v253, %v418
    %v451 = vmul.f32 %v258, %v418
    %v452 = vmul.f32 %v263, %v418
    %v453 = vmul.f32 %v268, %v418
    %v454 = vmul.f32 %v273, %v418
    %v455 = vmul.f32 %v278, %v418
    %v456 = vmul.f32 %v283, %v418
    %v457 = vmul.f32 %v288, %v418
    %v458 = vmul.f32 %v293, %v418
    %v459 = vmul.f32 %v298, %v418
    %v460 = vmul.f32 %v303, %v418
    %v461 = vmul.f32 %v308, %v418
    %v462 = vmul.f32 %v313, %v418
    %v463 = vmul.f32 %v318, %v418
    %v464 = vmul.f32 %v323, %v418
    %v465 = vmul.f32 %v328, %v418
    %v466 = vmul.f32 %v333, %v418
    %v467 = vmul.f32 %v338, %v418
    %v468 = vmul.f32 %v343, %v418
    %v469 = vmul.f32 %v348, %v418
    %v470 = vmul.f32 %v353, %v418
    %v471 = vmul.f32 %v358, %v418
    %v472 = vmul.f32 %v363, %v418
    %v473 = vmul.f32 %v368, %v418
    %v474 = vmul.f32 %v373, %v418
    %v475 = vmul.f32 %v378, %v418
    %v476 = vmul.f32 %v383, %v418
    %v477 = vmul.f32 %v388, %v418
    %v478 = vmul.f32 %v393, %v418
    %v479 = vmul.f32 %v398, %v418
    %v480 = vmul.f32 %v403, %v418
    %v481 = vmul.f32 %v408, %v418
    %v482 = vmul.f32 %v413, %v418
    %483 = vset.pattern.permute.xlu0 1
    %484 = vperm.xlu0 %483, %v31
    %v485 = vpop.permute.xlu0 %484
    %487 = vset.pattern.permute.xlu0 1
    %488 = vperm.xlu0 %487, %v32
    %v489 = vpop.permute.xlu0 %488
    %491 = vset.pattern.permute.xlu0 1
    %492 = vperm.xlu0 %491, %v33
    %v493 = vpop.permute.xlu0 %492
    %495 = vset.pattern.permute.xlu0 1
    %496 = vperm.xlu0 %495, %v34
    %v497 = vpop.permute.xlu0 %496
    %499 = vset.pattern.permute.xlu0 1
    %500 = vperm.xlu0 %499, %v35
    %v501 = vpop.permute.xlu0 %500
    %503 = vset.pattern.permute.xlu0 1
    %504 = vperm.xlu0 %503, %v36
    %v505 = vpop.permute.xlu0 %504
    %507 = vset.pattern.permute.xlu0 1
    %508 = vperm.xlu0 %507, %v37
    %v509 = vpop.permute.xlu0 %508
    %511 = vset.pattern.permute.xlu0 1
    %512 = vperm.xlu0 %511, %v38
    %v513 = vpop.permute.xlu0 %512
    %515 = vset.pattern.permute.xlu0 1
    %516 = vperm.xlu0 %515, %v39
    %v517 = vpop.permute.xlu0 %516
    %519 = vset.pattern.permute.xlu0 1
    %520 = vperm.xlu0 %519, %v40
    %v521 = vpop.permute.xlu0 %520
    %523 = vset.pattern.permute.xlu0 1
    %524 = vperm.xlu0 %523, %v41
    %v525 = vpop.permute.xlu0 %524
    %527 = vset.pattern.permute.xlu0 1
    %528 = vperm.xlu0 %527, %v42
    %v529 = vpop.permute.xlu0 %528
    %531 = vset.pattern.permute.xlu0 1
    %532 = vperm.xlu0 %531, %v43
    %v533 = vpop.permute.xlu0 %532
    %535 = vset.pattern.permute.xlu0 1
    %536 = vperm.xlu0 %535, %v44
    %v537 = vpop.permute.xlu0 %536
    %539 = vset.pattern.permute.xlu0 1
    %540 = vperm.xlu0 %539, %v45
    %v541 = vpop.permute.xlu0 %540
    %543 = vset.pattern.permute.xlu0 1
    %544 = vperm.xlu0 %543, %v46
    %v545 = vpop.permute.xlu0 %544
    %547 = vset.pattern.permute.xlu0 1
    %548 = vperm.xlu0 %547, %v47
    %v549 = vpop.permute.xlu0 %548
    %551 = vset.pattern.permute.xlu0 1
    %552 = vperm.xlu0 %551, %v48
    %v553 = vpop.permute.xlu0 %552
    %555 = vset.pattern.permute.xlu0 1
    %556 = vperm.xlu0 %555, %v49
    %v557 = vpop.permute.xlu0 %556
    %559 = vset.pattern.permute.xlu0 1
    %560 = vperm.xlu0 %559, %v50
    %v561 = vpop.permute.xlu0 %560
    %563 = vset.pattern.permute.xlu0 1
    %564 = vperm.xlu0 %563, %v51
    %v565 = vpop.permute.xlu0 %564
    %567 = vset.pattern.permute.xlu0 1
    %568 = vperm.xlu0 %567, %v52
    %v569 = vpop.permute.xlu0 %568
    %571 = vset.pattern.permute.xlu0 1
    %572 = vperm.xlu0 %571, %v53
    %v573 = vpop.permute.xlu0 %572
    %575 = vset.pattern.permute.xlu0 1
    %576 = vperm.xlu0 %575, %v54
    %v577 = vpop.permute.xlu0 %576
    %579 = vset.pattern.permute.xlu0 1
    %580 = vperm.xlu0 %579, %v55
    %v581 = vpop.permute.xlu0 %580
    %583 = vset.pattern.permute.xlu0 1
    %584 = vperm.xlu0 %583, %v56
    %v585 = vpop.permute.xlu0 %584
    %587 = vset.pattern.permute.xlu0 1
    %588 = vperm.xlu0 %587, %v57
    %v589 = vpop.permute.xlu0 %588
    %591 = vset.pattern.permute.xlu0 1
    %592 = vperm.xlu0 %591, %v58
    %v593 = vpop.permute.xlu0 %592
    %595 = vset.pattern.permute.xlu0 1
    %596 = vperm.xlu0 %595, %v59
    %v597 = vpop.permute.xlu0 %596
    %599 = vset.pattern.permute.xlu0 1
    %600 = vperm.xlu0 %599, %v60
    %v601 = vpop.permute.xlu0 %600
    %603 = vset.pattern.permute.xlu0 1
    %604 = vperm.xlu0 %603, %v61
    %v605 = vpop.permute.xlu0 %604
    %607 = vset.pattern.permute.xlu0 1
    %608 = vperm.xlu0 %607, %v62
    %v609 = vpop.permute.xlu0 %608
    %611 = vset.pattern.permute.xlu0 1
    %612 = vperm.xlu0 %611, %v63
    %v613 = vpop.permute.xlu0 %612
    %615 = vset.pattern.permute.xlu0 1
    %616 = vperm.xlu0 %615, %v64
    %v617 = vpop.permute.xlu0 %616
    %619 = vset.pattern.permute.xlu0 1
    %620 = vperm.xlu0 %619, %v65
    %v621 = vpop.permute.xlu0 %620
    %623 = vset.pattern.permute.xlu0 1
    %624 = vperm.xlu0 %623, %v66
    %v625 = vpop.permute.xlu0 %624
    %627 = vset.pattern.permute.xlu0 1
    %628 = vperm.xlu0 %627, %v67
    %v629 = vpop.permute.xlu0 %628
    %631 = vset.pattern.permute.xlu0 1
    %632 = vperm.xlu0 %631, %v68
    %v633 = vpop.permute.xlu0 %632
    %635 = vset.pattern.permute.xlu0 1
    %636 = vperm.xlu0 %635, %v69
    %v637 = vpop.permute.xlu0 %636
    %639 = vset.pattern.permute.xlu0 1
    %640 = vperm.xlu0 %639, %v70
    %v641 = vpop.permute.xlu0 %640
    %643 = vset.pattern.permute.xlu0 1
    %644 = vperm.xlu0 %643, %v71
    %v645 = vpop.permute.xlu0 %644
    %647 = vset.pattern.permute.xlu0 1
    %648 = vperm.xlu0 %647, %v72
    %v649 = vpop.permute.xlu0 %648
    %651 = vset.pattern.permute.xlu0 1
    %652 = vperm.xlu0 %651, %v73
    %v653 = vpop.permute.xlu0 %652
    %655 = vset.pattern.permute.xlu0 1
    %656 = vperm.xlu0 %655, %v74
    %v657 = vpop.permute.xlu0 %656
    %659 = vset.pattern.permute.xlu0 1
    %660 = vperm.xlu0 %659, %v75
    %v661 = vpop.permute.xlu0 %660
    %663 = vset.pattern.permute.xlu0 1
    %664 = vperm.xlu0 %663, %v76
    %v665 = vpop.permute.xlu0 %664
    %667 = vset.pattern.permute.xlu0 1
    %668 = vperm.xlu0 %667, %v77
    %v669 = vpop.permute.xlu0 %668
    %671 = vset.pattern.permute.xlu0 1
    %672 = vperm.xlu0 %671, %v78
    %v673 = vpop.permute.xlu0 %672
    %675 = vset.pattern.permute.xlu0 1
    %676 = vperm.xlu0 %675, %v79
    %v677 = vpop.permute.xlu0 %676
    %679 = vset.pattern.permute.xlu0 1
    %680 = vperm.xlu0 %679, %v80
    %v681 = vpop.permute.xlu0 %680
    %683 = vset.pattern.permute.xlu0 1
    %684 = vperm.xlu0 %683, %v81
    %v685 = vpop.permute.xlu0 %684
    %687 = vset.pattern.permute.xlu0 1
    %688 = vperm.xlu0 %687, %v82
    %v689 = vpop.permute.xlu0 %688
    %691 = vset.pattern.permute.xlu0 1
    %692 = vperm.xlu0 %691, %v83
    %v693 = vpop.permute.xlu0 %692
    %695 = vset.pattern.permute.xlu0 1
    %696 = vperm.xlu0 %695, %v84
    %v697 = vpop.permute.xlu0 %696
    %699 = vset.pattern.permute.xlu0 1
    %700 = vperm.xlu0 %699, %v85
    %v701 = vpop.permute.xlu0 %700
    %703 = vset.pattern.permute.xlu0 1
    %704 = vperm.xlu0 %703, %v86
    %v705 = vpop.permute.xlu0 %704
    %707 = vset.pattern.permute.xlu0 1
    %708 = vperm.xlu0 %707, %v87
    %v709 = vpop.permute.xlu0 %708
    %711 = vset.pattern.permute.xlu0 1
    %712 = vperm.xlu0 %711, %v88
    %v713 = vpop.permute.xlu0 %712
    %715 = vset.pattern.permute.xlu0 1
    %716 = vperm.xlu0 %715, %v89
    %v717 = vpop.permute.xlu0 %716
    %719 = vset.pattern.permute.xlu0 1
    %720 = vperm.xlu0 %719, %v90
    %v721 = vpop.permute.xlu0 %720
    %723 = vset.pattern.permute.xlu0 1
    %724 = vperm.xlu0 %723, %v91
    %v725 = vpop.permute.xlu0 %724
    %727 = vset.pattern.permute.xlu0 1
    %728 = vperm.xlu0 %727, %v92
    %v729 = vpop.permute.xlu0 %728
    %731 = vset.pattern.permute.xlu0 1
    %732 = vperm.xlu0 %731, %v93
    %v733 = vpop.permute.xlu0 %732
    %735 = vset.pattern.permute.xlu0 1
    %736 = vperm.xlu0 %735, %v94
    %v737 = vpop.permute.xlu0 %736
    %v739 = vlaneseq
    %v740 = vshrl.u32 %v739, 7
    %v741 = vsub.s32 1, %v740
    %v742 = vrot.slane %v30, %v741
    %v743 = vmul.f32 %v485, %v742
    %v744 = vmul.f32 %v489, %v742
    %v745 = vmul.f32 %v493, %v742
    %v746 = vmul.f32 %v497, %v742
    %v747 = vmul.f32 %v501, %v742
    %v748 = vmul.f32 %v505, %v742
    %v749 = vmul.f32 %v509, %v742
    %v750 = vmul.f32 %v513, %v742
    %v751 = vmul.f32 %v517, %v742
    %v752 = vmul.f32 %v521, %v742
    %v753 = vmul.f32 %v525, %v742
    %v754 = vmul.f32 %v529, %v742
    %v755 = vmul.f32 %v533, %v742
    %v756 = vmul.f32 %v537, %v742
    %v757 = vmul.f32 %v541, %v742
    %v758 = vmul.f32 %v545, %v742
    %v759 = vmul.f32 %v549, %v742
    %v760 = vmul.f32 %v553, %v742
    %v761 = vmul.f32 %v557, %v742
    %v762 = vmul.f32 %v561, %v742
    %v763 = vmul.f32 %v565, %v742
    %v764 = vmul.f32 %v569, %v742
    %v765 = vmul.f32 %v573, %v742
    %v766 = vmul.f32 %v577, %v742
    %v767 = vmul.f32 %v581, %v742
    %v768 = vmul.f32 %v585, %v742
    %v769 = vmul.f32 %v589, %v742
    %v770 = vmul.f32 %v593, %v742
    %v771 = vmul.f32 %v597, %v742
    %v772 = vmul.f32 %v601, %v742
    %v773 = vmul.f32 %v605, %v742
    %v774 = vmul.f32 %v609, %v742
    %v775 = vmul.f32 %v613, %v742
    %v776 = vmul.f32 %v617, %v742
    %v777 = vmul.f32 %v621, %v742
    %v778 = vmul.f32 %v625, %v742
    %v779 = vmul.f32 %v629, %v742
    %v780 = vmul.f32 %v633, %v742
    %v781 = vmul.f32 %v637, %v742
    %v782 = vmul.f32 %v641, %v742
    %v783 = vmul.f32 %v645, %v742
    %v784 = vmul.f32 %v649, %v742
    %v785 = vmul.f32 %v653, %v742
    %v786 = vmul.f32 %v657, %v742
    %v787 = vmul.f32 %v661, %v742
    %v788 = vmul.f32 %v665, %v742
    %v789 = vmul.f32 %v669, %v742
    %v790 = vmul.f32 %v673, %v742
    %v791 = vmul.f32 %v677, %v742
    %v792 = vmul.f32 %v681, %v742
    %v793 = vmul.f32 %v685, %v742
    %v794 = vmul.f32 %v689, %v742
    %v795 = vmul.f32 %v693, %v742
    %v796 = vmul.f32 %v697, %v742
    %v797 = vmul.f32 %v701, %v742
    %v798 = vmul.f32 %v705, %v742
    %v799 = vmul.f32 %v709, %v742
    %v800 = vmul.f32 %v713, %v742
    %v801 = vmul.f32 %v717, %v742
    %v802 = vmul.f32 %v721, %v742
    %v803 = vmul.f32 %v725, %v742
    %v804 = vmul.f32 %v729, %v742
    %v805 = vmul.f32 %v733, %v742
    %v806 = vmul.f32 %v737, %v742
    %v807 = vadd.f32 %v419, %v743
    %v808 = vadd.f32 %v420, %v744
    %v809 = vadd.f32 %v421, %v745
    %v810 = vadd.f32 %v422, %v746
    %v811 = vadd.f32 %v423, %v747
    %v812 = vadd.f32 %v424, %v748
    %v813 = vadd.f32 %v425, %v749
    %v814 = vadd.f32 %v426, %v750
    %v815 = vadd.f32 %v427, %v751
    %v816 = vadd.f32 %v428, %v752
    %v817 = vadd.f32 %v429, %v753
    %v818 = vadd.f32 %v430, %v754
    %v819 = vadd.f32 %v431, %v755
    %v820 = vadd.f32 %v432, %v756
    %v821 = vadd.f32 %v433, %v757
    %v822 = vadd.f32 %v434, %v758
    %v823 = vadd.f32 %v435, %v759
    %v824 = vadd.f32 %v436, %v760
    %v825 = vadd.f32 %v437, %v761
    %v826 = vadd.f32 %v438, %v762
    %v827 = vadd.f32 %v439, %v763
    %v828 = vadd.f32 %v440, %v764
    %v829 = vadd.f32 %v441, %v765
    %v830 = vadd.f32 %v442, %v766
    %v831 = vadd.f32 %v443, %v767
    %v832 = vadd.f32 %v444, %v768
    %v833 = vadd.f32 %v445, %v769
    %v834 = vadd.f32 %v446, %v770
    %v835 = vadd.f32 %v447, %v771
    %v836 = vadd.f32 %v448, %v772
    %v837 = vadd.f32 %v449, %v773
    %v838 = vadd.f32 %v450, %v774
    %v839 = vadd.f32 %v451, %v775
    %v840 = vadd.f32 %v452, %v776
    %v841 = vadd.f32 %v453, %v777
    %v842 = vadd.f32 %v454, %v778
    %v843 = vadd.f32 %v455, %v779
    %v844 = vadd.f32 %v456, %v780
    %v845 = vadd.f32 %v457, %v781
    %v846 = vadd.f32 %v458, %v782
    %v847 = vadd.f32 %v459, %v783
    %v848 = vadd.f32 %v460, %v784
    %v849 = vadd.f32 %v461, %v785
    %v850 = vadd.f32 %v462, %v786
    %v851 = vadd.f32 %v463, %v787
    %v852 = vadd.f32 %v464, %v788
    %v853 = vadd.f32 %v465, %v789
    %v854 = vadd.f32 %v466, %v790
    %v855 = vadd.f32 %v467, %v791
    %v856 = vadd.f32 %v468, %v792
    %v857 = vadd.f32 %v469, %v793
    %v858 = vadd.f32 %v470, %v794
    %v859 = vadd.f32 %v471, %v795
    %v860 = vadd.f32 %v472, %v796
    %v861 = vadd.f32 %v473, %v797
    %v862 = vadd.f32 %v474, %v798
    %v863 = vadd.f32 %v475, %v799
    %v864 = vadd.f32 %v476, %v800
    %v865 = vadd.f32 %v477, %v801
    %v866 = vadd.f32 %v478, %v802
    %v867 = vadd.f32 %v479, %v803
    %v868 = vadd.f32 %v480, %v804
    %v869 = vadd.f32 %v481, %v805
    %v870 = vadd.f32 %v482, %v806
    %871 = vset.pattern.permute.xlu0 2
    %872 = vperm.xlu0 %871, %v31
    %v873 = vpop.permute.xlu0 %872
    %875 = vset.pattern.permute.xlu0 2
    %876 = vperm.xlu0 %875, %v32
    %v877 = vpop.permute.xlu0 %876
    %879 = vset.pattern.permute.xlu0 2
    %880 = vperm.xlu0 %879, %v33
    %v881 = vpop.permute.xlu0 %880
    %883 = vset.pattern.permute.xlu0 2
    %884 = vperm.xlu0 %883, %v34
    %v885 = vpop.permute.xlu0 %884
    %887 = vset.pattern.permute.xlu0 2
    %888 = vperm.xlu0 %887, %v35
    %v889 = vpop.permute.xlu0 %888
    %891 = vset.pattern.permute.xlu0 2
    %892 = vperm.xlu0 %891, %v36
    %v893 = vpop.permute.xlu0 %892
    %895 = vset.pattern.permute.xlu0 2
    %896 = vperm.xlu0 %895, %v37
    %v897 = vpop.permute.xlu0 %896
    %899 = vset.pattern.permute.xlu0 2
    %900 = vperm.xlu0 %899, %v38
    %v901 = vpop.permute.xlu0 %900
    %903 = vset.pattern.permute.xlu0 2
    %904 = vperm.xlu0 %903, %v39
    %v905 = vpop.permute.xlu0 %904
    %907 = vset.pattern.permute.xlu0 2
    %908 = vperm.xlu0 %907, %v40
    %v909 = vpop.permute.xlu0 %908
    %911 = vset.pattern.permute.xlu0 2
    %912 = vperm.xlu0 %911, %v41
    %v913 = vpop.permute.xlu0 %912
    %915 = vset.pattern.permute.xlu0 2
    %916 = vperm.xlu0 %915, %v42
    %v917 = vpop.permute.xlu0 %916
    %919 = vset.pattern.permute.xlu0 2
    %920 = vperm.xlu0 %919, %v43
    %v921 = vpop.permute.xlu0 %920
    %923 = vset.pattern.permute.xlu0 2
    %924 = vperm.xlu0 %923, %v44
    %v925 = vpop.permute.xlu0 %924
    %927 = vset.pattern.permute.xlu0 2
    %928 = vperm.xlu0 %927, %v45
    %v929 = vpop.permute.xlu0 %928
    %931 = vset.pattern.permute.xlu0 2
    %932 = vperm.xlu0 %931, %v46
    %v933 = vpop.permute.xlu0 %932
    %935 = vset.pattern.permute.xlu0 2
    %936 = vperm.xlu0 %935, %v47
    %v937 = vpop.permute.xlu0 %936
    %939 = vset.pattern.permute.xlu0 2
    %940 = vperm.xlu0 %939, %v48
    %v941 = vpop.permute.xlu0 %940
    %943 = vset.pattern.permute.xlu0 2
    %944 = vperm.xlu0 %943, %v49
    %v945 = vpop.permute.xlu0 %944
    %947 = vset.pattern.permute.xlu0 2
    %948 = vperm.xlu0 %947, %v50
    %v949 = vpop.permute.xlu0 %948
    %951 = vset.pattern.permute.xlu0 2
    %952 = vperm.xlu0 %951, %v51
    %v953 = vpop.permute.xlu0 %952
    %955 = vset.pattern.permute.xlu0 2
    %956 = vperm.xlu0 %955, %v52
    %v957 = vpop.permute.xlu0 %956
    %959 = vset.pattern.permute.xlu0 2
    %960 = vperm.xlu0 %959, %v53
    %v961 = vpop.permute.xlu0 %960
    %963 = vset.pattern.permute.xlu0 2
    %964 = vperm.xlu0 %963, %v54
    %v965 = vpop.permute.xlu0 %964
    %967 = vset.pattern.permute.xlu0 2
    %968 = vperm.xlu0 %967, %v55
    %v969 = vpop.permute.xlu0 %968
    %971 = vset.pattern.permute.xlu0 2
    %972 = vperm.xlu0 %971, %v56
    %v973 = vpop.permute.xlu0 %972
    %975 = vset.pattern.permute.xlu0 2
    %976 = vperm.xlu0 %975, %v57
    %v977 = vpop.permute.xlu0 %976
    %979 = vset.pattern.permute.xlu0 2
    %980 = vperm.xlu0 %979, %v58
    %v981 = vpop.permute.xlu0 %980
    %983 = vset.pattern.permute.xlu0 2
    %984 = vperm.xlu0 %983, %v59
    %v985 = vpop.permute.xlu0 %984
    %987 = vset.pattern.permute.xlu0 2
    %988 = vperm.xlu0 %987, %v60
    %v989 = vpop.permute.xlu0 %988
    %991 = vset.pattern.permute.xlu0 2
    %992 = vperm.xlu0 %991, %v61
    %v993 = vpop.permute.xlu0 %992
    %995 = vset.pattern.permute.xlu0 2
    %996 = vperm.xlu0 %995, %v62
    %v997 = vpop.permute.xlu0 %996
    %999 = vset.pattern.permute.xlu0 2
    %1000 = vperm.xlu0 %999, %v63
    %v1001 = vpop.permute.xlu0 %1000
    %1003 = vset.pattern.permute.xlu0 2
    %1004 = vperm.xlu0 %1003, %v64
    %v1005 = vpop.permute.xlu0 %1004
    %1007 = vset.pattern.permute.xlu0 2
    %1008 = vperm.xlu0 %1007, %v65
    %v1009 = vpop.permute.xlu0 %1008
    %1011 = vset.pattern.permute.xlu0 2
    %1012 = vperm.xlu0 %1011, %v66
    %v1013 = vpop.permute.xlu0 %1012
    %1015 = vset.pattern.permute.xlu0 2
    %1016 = vperm.xlu0 %1015, %v67
    %v1017 = vpop.permute.xlu0 %1016
    %1019 = vset.pattern.permute.xlu0 2
    %1020 = vperm.xlu0 %1019, %v68
    %v1021 = vpop.permute.xlu0 %1020
    %1023 = vset.pattern.permute.xlu0 2
    %1024 = vperm.xlu0 %1023, %v69
    %v1025 = vpop.permute.xlu0 %1024
    %1027 = vset.pattern.permute.xlu0 2
    %1028 = vperm.xlu0 %1027, %v70
    %v1029 = vpop.permute.xlu0 %1028
    %1031 = vset.pattern.permute.xlu0 2
    %1032 = vperm.xlu0 %1031, %v71
    %v1033 = vpop.permute.xlu0 %1032
    %1035 = vset.pattern.permute.xlu0 2
    %1036 = vperm.xlu0 %1035, %v72
    %v1037 = vpop.permute.xlu0 %1036
    %1039 = vset.pattern.permute.xlu0 2
    %1040 = vperm.xlu0 %1039, %v73
    %v1041 = vpop.permute.xlu0 %1040
    %1043 = vset.pattern.permute.xlu0 2
    %1044 = vperm.xlu0 %1043, %v74
    %v1045 = vpop.permute.xlu0 %1044
    %1047 = vset.pattern.permute.xlu0 2
    %1048 = vperm.xlu0 %1047, %v75
    %v1049 = vpop.permute.xlu0 %1048
    %1051 = vset.pattern.permute.xlu0 2
    %1052 = vperm.xlu0 %1051, %v76
    %v1053 = vpop.permute.xlu0 %1052
    %1055 = vset.pattern.permute.xlu0 2
    %1056 = vperm.xlu0 %1055, %v77
    %v1057 = vpop.permute.xlu0 %1056
    %1059 = vset.pattern.permute.xlu0 2
    %1060 = vperm.xlu0 %1059, %v78
    %v1061 = vpop.permute.xlu0 %1060
    %1063 = vset.pattern.permute.xlu0 2
    %1064 = vperm.xlu0 %1063, %v79
    %v1065 = vpop.permute.xlu0 %1064
    %1067 = vset.pattern.permute.xlu0 2
    %1068 = vperm.xlu0 %1067, %v80
    %v1069 = vpop.permute.xlu0 %1068
    %1071 = vset.pattern.permute.xlu0 2
    %1072 = vperm.xlu0 %1071, %v81
    %v1073 = vpop.permute.xlu0 %1072
    %1075 = vset.pattern.permute.xlu0 2
    %1076 = vperm.xlu0 %1075, %v82
    %v1077 = vpop.permute.xlu0 %1076
    %1079 = vset.pattern.permute.xlu0 2
    %1080 = vperm.xlu0 %1079, %v83
    %v1081 = vpop.permute.xlu0 %1080
    %1083 = vset.pattern.permute.xlu0 2
    %1084 = vperm.xlu0 %1083, %v84
    %v1085 = vpop.permute.xlu0 %1084
    %1087 = vset.pattern.permute.xlu0 2
    %1088 = vperm.xlu0 %1087, %v85
    %v1089 = vpop.permute.xlu0 %1088
    %1091 = vset.pattern.permute.xlu0 2
    %1092 = vperm.xlu0 %1091, %v86
    %v1093 = vpop.permute.xlu0 %1092
    %1095 = vset.pattern.permute.xlu0 2
    %1096 = vperm.xlu0 %1095, %v87
    %v1097 = vpop.permute.xlu0 %1096
    %1099 = vset.pattern.permute.xlu0 2
    %1100 = vperm.xlu0 %1099, %v88
    %v1101 = vpop.permute.xlu0 %1100
    %1103 = vset.pattern.permute.xlu0 2
    %1104 = vperm.xlu0 %1103, %v89
    %v1105 = vpop.permute.xlu0 %1104
    %1107 = vset.pattern.permute.xlu0 2
    %1108 = vperm.xlu0 %1107, %v90
    %v1109 = vpop.permute.xlu0 %1108
    %1111 = vset.pattern.permute.xlu0 2
    %1112 = vperm.xlu0 %1111, %v91
    %v1113 = vpop.permute.xlu0 %1112
    %1115 = vset.pattern.permute.xlu0 2
    %1116 = vperm.xlu0 %1115, %v92
    %v1117 = vpop.permute.xlu0 %1116
    %1119 = vset.pattern.permute.xlu0 2
    %1120 = vperm.xlu0 %1119, %v93
    %v1121 = vpop.permute.xlu0 %1120
    %1123 = vset.pattern.permute.xlu0 2
    %1124 = vperm.xlu0 %1123, %v94
    %v1125 = vpop.permute.xlu0 %1124
    %v1127 = vlaneseq
    %v1128 = vshrl.u32 %v1127, 7
    %v1129 = vsub.s32 2, %v1128
    %v1130 = vrot.slane %v30, %v1129
    %v1131 = vmul.f32 %v873, %v1130
    %v1132 = vmul.f32 %v877, %v1130
    %v1133 = vmul.f32 %v881, %v1130
    %v1134 = vmul.f32 %v885, %v1130
    %v1135 = vmul.f32 %v889, %v1130
    %v1136 = vmul.f32 %v893, %v1130
    %v1137 = vmul.f32 %v897, %v1130
    %v1138 = vmul.f32 %v901, %v1130
    %v1139 = vmul.f32 %v905, %v1130
    %v1140 = vmul.f32 %v909, %v1130
    %v1141 = vmul.f32 %v913, %v1130
    %v1142 = vmul.f32 %v917, %v1130
    %v1143 = vmul.f32 %v921, %v1130
    %v1144 = vmul.f32 %v925, %v1130
    %v1145 = vmul.f32 %v929, %v1130
    %v1146 = vmul.f32 %v933, %v1130
    %v1147 = vmul.f32 %v937, %v1130
    %v1148 = vmul.f32 %v941, %v1130
    %v1149 = vmul.f32 %v945, %v1130
    %v1150 = vmul.f32 %v949, %v1130
    %v1151 = vmul.f32 %v953, %v1130
    %v1152 = vmul.f32 %v957, %v1130
    %v1153 = vmul.f32 %v961, %v1130
    %v1154 = vmul.f32 %v965, %v1130
    %v1155 = vmul.f32 %v969, %v1130
    %v1156 = vmul.f32 %v973, %v1130
    %v1157 = vmul.f32 %v977, %v1130
    %v1158 = vmul.f32 %v981, %v1130
    %v1159 = vmul.f32 %v985, %v1130
    %v1160 = vmul.f32 %v989, %v1130
    %v1161 = vmul.f32 %v993, %v1130
    %v1162 = vmul.f32 %v997, %v1130
    %v1163 = vmul.f32 %v1001, %v1130
    %v1164 = vmul.f32 %v1005, %v1130
    %v1165 = vmul.f32 %v1009, %v1130
    %v1166 = vmul.f32 %v1013, %v1130
    %v1167 = vmul.f32 %v1017, %v1130
    %v1168 = vmul.f32 %v1021, %v1130
    %v1169 = vmul.f32 %v1025, %v1130
    %v1170 = vmul.f32 %v1029, %v1130
    %v1171 = vmul.f32 %v1033, %v1130
    %v1172 = vmul.f32 %v1037, %v1130
    %v1173 = vmul.f32 %v1041, %v1130
    %v1174 = vmul.f32 %v1045, %v1130
    %v1175 = vmul.f32 %v1049, %v1130
    %v1176 = vmul.f32 %v1053, %v1130
    %v1177 = vmul.f32 %v1057, %v1130
    %v1178 = vmul.f32 %v1061, %v1130
    %v1179 = vmul.f32 %v1065, %v1130
    %v1180 = vmul.f32 %v1069, %v1130
    %v1181 = vmul.f32 %v1073, %v1130
    %v1182 = vmul.f32 %v1077, %v1130
    %v1183 = vmul.f32 %v1081, %v1130
    %v1184 = vmul.f32 %v1085, %v1130
    %v1185 = vmul.f32 %v1089, %v1130
    %v1186 = vmul.f32 %v1093, %v1130
    %v1187 = vmul.f32 %v1097, %v1130
    %v1188 = vmul.f32 %v1101, %v1130
    %v1189 = vmul.f32 %v1105, %v1130
    %v1190 = vmul.f32 %v1109, %v1130
    %v1191 = vmul.f32 %v1113, %v1130
    %v1192 = vmul.f32 %v1117, %v1130
    %v1193 = vmul.f32 %v1121, %v1130
    %v1194 = vmul.f32 %v1125, %v1130
    %v1195 = vadd.f32 %v807, %v1131
    %v1196 = vadd.f32 %v808, %v1132
    %v1197 = vadd.f32 %v809, %v1133
    %v1198 = vadd.f32 %v810, %v1134
    %v1199 = vadd.f32 %v811, %v1135
    %v1200 = vadd.f32 %v812, %v1136
    %v1201 = vadd.f32 %v813, %v1137
    %v1202 = vadd.f32 %v814, %v1138
    %v1203 = vadd.f32 %v815, %v1139
    %v1204 = vadd.f32 %v816, %v1140
    %v1205 = vadd.f32 %v817, %v1141
    %v1206 = vadd.f32 %v818, %v1142
    %v1207 = vadd.f32 %v819, %v1143
    %v1208 = vadd.f32 %v820, %v1144
    %v1209 = vadd.f32 %v821, %v1145
    %v1210 = vadd.f32 %v822, %v1146
    %v1211 = vadd.f32 %v823, %v1147
    %v1212 = vadd.f32 %v824, %v1148
    %v1213 = vadd.f32 %v825, %v1149
    %v1214 = vadd.f32 %v826, %v1150
    %v1215 = vadd.f32 %v827, %v1151
    %v1216 = vadd.f32 %v828, %v1152
    %v1217 = vadd.f32 %v829, %v1153
    %v1218 = vadd.f32 %v830, %v1154
    %v1219 = vadd.f32 %v831, %v1155
    %v1220 = vadd.f32 %v832, %v1156
    %v1221 = vadd.f32 %v833, %v1157
    %v1222 = vadd.f32 %v834, %v1158
    %v1223 = vadd.f32 %v835, %v1159
    %v1224 = vadd.f32 %v836, %v1160
    %v1225 = vadd.f32 %v837, %v1161
    %v1226 = vadd.f32 %v838, %v1162
    %v1227 = vadd.f32 %v839, %v1163
    %v1228 = vadd.f32 %v840, %v1164
    %v1229 = vadd.f32 %v841, %v1165
    %v1230 = vadd.f32 %v842, %v1166
    %v1231 = vadd.f32 %v843, %v1167
    %v1232 = vadd.f32 %v844, %v1168
    %v1233 = vadd.f32 %v845, %v1169
    %v1234 = vadd.f32 %v846, %v1170
    %v1235 = vadd.f32 %v847, %v1171
    %v1236 = vadd.f32 %v848, %v1172
    %v1237 = vadd.f32 %v849, %v1173
    %v1238 = vadd.f32 %v850, %v1174
    %v1239 = vadd.f32 %v851, %v1175
    %v1240 = vadd.f32 %v852, %v1176
    %v1241 = vadd.f32 %v853, %v1177
    %v1242 = vadd.f32 %v854, %v1178
    %v1243 = vadd.f32 %v855, %v1179
    %v1244 = vadd.f32 %v856, %v1180
    %v1245 = vadd.f32 %v857, %v1181
    %v1246 = vadd.f32 %v858, %v1182
    %v1247 = vadd.f32 %v859, %v1183
    %v1248 = vadd.f32 %v860, %v1184
    %v1249 = vadd.f32 %v861, %v1185
    %v1250 = vadd.f32 %v862, %v1186
    %v1251 = vadd.f32 %v863, %v1187
    %v1252 = vadd.f32 %v864, %v1188
    %v1253 = vadd.f32 %v865, %v1189
    %v1254 = vadd.f32 %v866, %v1190
    %v1255 = vadd.f32 %v867, %v1191
    %v1256 = vadd.f32 %v868, %v1192
    %v1257 = vadd.f32 %v869, %v1193
    %v1258 = vadd.f32 %v870, %v1194
    %v1259 = vld [vmem:[%s2] sm:$0xff]
    %v1260 = vld [vmem:[%s2 + $0x8] sm:$0xff]
    %v1261 = vld [vmem:[%s2 + $0x10] sm:$0xff]
    %v1262 = vld [vmem:[%s2 + $0x18] sm:$0xff]
    %v1263 = vld [vmem:[%s2 + $0x20] sm:$0xff]
    %v1264 = vld [vmem:[%s2 + $0x28] sm:$0xff]
    %v1265 = vld [vmem:[%s2 + $0x30] sm:$0xff]
    %v1266 = vld [vmem:[%s2 + $0x38] sm:$0xff]
    %v1267 = vld [vmem:[%s2 + $0x40] sm:$0xff]
    %v1268 = vld [vmem:[%s2 + $0x48] sm:$0xff]
    %v1269 = vld [vmem:[%s2 + $0x50] sm:$0xff]
    %v1270 = vld [vmem:[%s2 + $0x58] sm:$0xff]
    %v1271 = vld [vmem:[%s2 + $0x60] sm:$0xff]
    %v1272 = vld [vmem:[%s2 + $0x68] sm:$0xff]
    %v1273 = vld [vmem:[%s2 + $0x70] sm:$0xff]
    %v1274 = vld [vmem:[%s2 + $0x78] sm:$0xff]
    %v1275 = vld [vmem:[%s2 + $0x80] sm:$0xff]
    %v1276 = vld [vmem:[%s2 + $0x88] sm:$0xff]
    %v1277 = vld [vmem:[%s2 + $0x90] sm:$0xff]
    %v1278 = vld [vmem:[%s2 + $0x98] sm:$0xff]
    %v1279 = vld [vmem:[%s2 + $0xa0] sm:$0xff]
    %v1280 = vld [vmem:[%s2 + $0xa8] sm:$0xff]
    %v1281 = vld [vmem:[%s2 + $0xb0] sm:$0xff]
    %v1282 = vld [vmem:[%s2 + $0xb8] sm:$0xff]
    %v1283 = vld [vmem:[%s2 + $0xc0] sm:$0xff]
    %v1284 = vld [vmem:[%s2 + $0xc8] sm:$0xff]
    %v1285 = vld [vmem:[%s2 + $0xd0] sm:$0xff]
    %v1286 = vld [vmem:[%s2 + $0xd8] sm:$0xff]
    %v1287 = vld [vmem:[%s2 + $0xe0] sm:$0xff]
    %v1288 = vld [vmem:[%s2 + $0xe8] sm:$0xff]
    %v1289 = vld [vmem:[%s2 + $0xf0] sm:$0xff]
    %v1290 = vld [vmem:[%s2 + $0xf8] sm:$0xff]
    %v1291 = vld [vmem:[%s2 + $0x100] sm:$0xff]
    %v1292 = vld [vmem:[%s2 + $0x108] sm:$0xff]
    %v1293 = vld [vmem:[%s2 + $0x110] sm:$0xff]
    %v1294 = vld [vmem:[%s2 + $0x118] sm:$0xff]
    %v1295 = vld [vmem:[%s2 + $0x120] sm:$0xff]
    %v1296 = vld [vmem:[%s2 + $0x128] sm:$0xff]
    %v1297 = vld [vmem:[%s2 + $0x130] sm:$0xff]
    %v1298 = vld [vmem:[%s2 + $0x138] sm:$0xff]
    %v1299 = vld [vmem:[%s2 + $0x140] sm:$0xff]
    %v1300 = vld [vmem:[%s2 + $0x148] sm:$0xff]
    %v1301 = vld [vmem:[%s2 + $0x150] sm:$0xff]
    %v1302 = vld [vmem:[%s2 + $0x158] sm:$0xff]
    %v1303 = vld [vmem:[%s2 + $0x160] sm:$0xff]
    %v1304 = vld [vmem:[%s2 + $0x168] sm:$0xff]
    %v1305 = vld [vmem:[%s2 + $0x170] sm:$0xff]
    %v1306 = vld [vmem:[%s2 + $0x178] sm:$0xff]
    %v1307 = vld [vmem:[%s2 + $0x180] sm:$0xff]
    %v1308 = vld [vmem:[%s2 + $0x188] sm:$0xff]
    %v1309 = vld [vmem:[%s2 + $0x190] sm:$0xff]
    %v1310 = vld [vmem:[%s2 + $0x198] sm:$0xff]
    %v1311 = vld [vmem:[%s2 + $0x1a0] sm:$0xff]
    %v1312 = vld [vmem:[%s2 + $0x1a8] sm:$0xff]
    %v1313 = vld [vmem:[%s2 + $0x1b0] sm:$0xff]
    %v1314 = vld [vmem:[%s2 + $0x1b8] sm:$0xff]
    %v1315 = vld [vmem:[%s2 + $0x1c0] sm:$0xff]
    %v1316 = vld [vmem:[%s2 + $0x1c8] sm:$0xff]
    %v1317 = vld [vmem:[%s2 + $0x1d0] sm:$0xff]
    %v1318 = vld [vmem:[%s2 + $0x1d8] sm:$0xff]
    %v1319 = vld [vmem:[%s2 + $0x1e0] sm:$0xff]
    %v1320 = vld [vmem:[%s2 + $0x1e8] sm:$0xff]
    %v1321 = vld [vmem:[%s2 + $0x1f0] sm:$0xff]
    %v1322 = vld [vmem:[%s2 + $0x1f8] sm:$0xff]
    %1324 = vset.pattern.permute.xlu0 0
    %1325 = vperm.xlu0 %1324, %v1259
    %v1326 = vpop.permute.xlu0 %1325
    %1329 = vset.pattern.permute.xlu0 0
    %1330 = vperm.xlu0 %1329, %v1260
    %v1331 = vpop.permute.xlu0 %1330
    %1334 = vset.pattern.permute.xlu0 0
    %1335 = vperm.xlu0 %1334, %v1261
    %v1336 = vpop.permute.xlu0 %1335
    %1339 = vset.pattern.permute.xlu0 0
    %1340 = vperm.xlu0 %1339, %v1262
    %v1341 = vpop.permute.xlu0 %1340
    %1344 = vset.pattern.permute.xlu0 0
    %1345 = vperm.xlu0 %1344, %v1263
    %v1346 = vpop.permute.xlu0 %1345
    %1349 = vset.pattern.permute.xlu0 0
    %1350 = vperm.xlu0 %1349, %v1264
    %v1351 = vpop.permute.xlu0 %1350
    %1354 = vset.pattern.permute.xlu0 0
    %1355 = vperm.xlu0 %1354, %v1265
    %v1356 = vpop.permute.xlu0 %1355
    %1359 = vset.pattern.permute.xlu0 0
    %1360 = vperm.xlu0 %1359, %v1266
    %v1361 = vpop.permute.xlu0 %1360
    %1364 = vset.pattern.permute.xlu0 0
    %1365 = vperm.xlu0 %1364, %v1267
    %v1366 = vpop.permute.xlu0 %1365
    %1369 = vset.pattern.permute.xlu0 0
    %1370 = vperm.xlu0 %1369, %v1268
    %v1371 = vpop.permute.xlu0 %1370
    %1374 = vset.pattern.permute.xlu0 0
    %1375 = vperm.xlu0 %1374, %v1269
    %v1376 = vpop.permute.xlu0 %1375
    %1379 = vset.pattern.permute.xlu0 0
    %1380 = vperm.xlu0 %1379, %v1270
    %v1381 = vpop.permute.xlu0 %1380
    %1384 = vset.pattern.permute.xlu0 0
    %1385 = vperm.xlu0 %1384, %v1271
    %v1386 = vpop.permute.xlu0 %1385
    %1389 = vset.pattern.permute.xlu0 0
    %1390 = vperm.xlu0 %1389, %v1272
    %v1391 = vpop.permute.xlu0 %1390
    %1394 = vset.pattern.permute.xlu0 0
    %1395 = vperm.xlu0 %1394, %v1273
    %v1396 = vpop.permute.xlu0 %1395
    %1399 = vset.pattern.permute.xlu0 0
    %1400 = vperm.xlu0 %1399, %v1274
    %v1401 = vpop.permute.xlu0 %1400
    %1404 = vset.pattern.permute.xlu0 0
    %1405 = vperm.xlu0 %1404, %v1275
    %v1406 = vpop.permute.xlu0 %1405
    %1409 = vset.pattern.permute.xlu0 0
    %1410 = vperm.xlu0 %1409, %v1276
    %v1411 = vpop.permute.xlu0 %1410
    %1414 = vset.pattern.permute.xlu0 0
    %1415 = vperm.xlu0 %1414, %v1277
    %v1416 = vpop.permute.xlu0 %1415
    %1419 = vset.pattern.permute.xlu0 0
    %1420 = vperm.xlu0 %1419, %v1278
    %v1421 = vpop.permute.xlu0 %1420
    %1424 = vset.pattern.permute.xlu0 0
    %1425 = vperm.xlu0 %1424, %v1279
    %v1426 = vpop.permute.xlu0 %1425
    %1429 = vset.pattern.permute.xlu0 0
    %1430 = vperm.xlu0 %1429, %v1280
    %v1431 = vpop.permute.xlu0 %1430
    %1434 = vset.pattern.permute.xlu0 0
    %1435 = vperm.xlu0 %1434, %v1281
    %v1436 = vpop.permute.xlu0 %1435
    %1439 = vset.pattern.permute.xlu0 0
    %1440 = vperm.xlu0 %1439, %v1282
    %v1441 = vpop.permute.xlu0 %1440
    %1444 = vset.pattern.permute.xlu0 0
    %1445 = vperm.xlu0 %1444, %v1283
    %v1446 = vpop.permute.xlu0 %1445
    %1449 = vset.pattern.permute.xlu0 0
    %1450 = vperm.xlu0 %1449, %v1284
    %v1451 = vpop.permute.xlu0 %1450
    %1454 = vset.pattern.permute.xlu0 0
    %1455 = vperm.xlu0 %1454, %v1285
    %v1456 = vpop.permute.xlu0 %1455
    %1459 = vset.pattern.permute.xlu0 0
    %1460 = vperm.xlu0 %1459, %v1286
    %v1461 = vpop.permute.xlu0 %1460
    %1464 = vset.pattern.permute.xlu0 0
    %1465 = vperm.xlu0 %1464, %v1287
    %v1466 = vpop.permute.xlu0 %1465
    %1469 = vset.pattern.permute.xlu0 0
    %1470 = vperm.xlu0 %1469, %v1288
    %v1471 = vpop.permute.xlu0 %1470
    %1474 = vset.pattern.permute.xlu0 0
    %1475 = vperm.xlu0 %1474, %v1289
    %v1476 = vpop.permute.xlu0 %1475
    %1479 = vset.pattern.permute.xlu0 0
    %1480 = vperm.xlu0 %1479, %v1290
    %v1481 = vpop.permute.xlu0 %1480
    %1484 = vset.pattern.permute.xlu0 0
    %1485 = vperm.xlu0 %1484, %v1291
    %v1486 = vpop.permute.xlu0 %1485
    %1489 = vset.pattern.permute.xlu0 0
    %1490 = vperm.xlu0 %1489, %v1292
    %v1491 = vpop.permute.xlu0 %1490
    %1494 = vset.pattern.permute.xlu0 0
    %1495 = vperm.xlu0 %1494, %v1293
    %v1496 = vpop.permute.xlu0 %1495
    %1499 = vset.pattern.permute.xlu0 0
    %1500 = vperm.xlu0 %1499, %v1294
    %v1501 = vpop.permute.xlu0 %1500
    %1504 = vset.pattern.permute.xlu0 0
    %1505 = vperm.xlu0 %1504, %v1295
    %v1506 = vpop.permute.xlu0 %1505
    %1509 = vset.pattern.permute.xlu0 0
    %1510 = vperm.xlu0 %1509, %v1296
    %v1511 = vpop.permute.xlu0 %1510
    %1514 = vset.pattern.permute.xlu0 0
    %1515 = vperm.xlu0 %1514, %v1297
    %v1516 = vpop.permute.xlu0 %1515
    %1519 = vset.pattern.permute.xlu0 0
    %1520 = vperm.xlu0 %1519, %v1298
    %v1521 = vpop.permute.xlu0 %1520
    %1524 = vset.pattern.permute.xlu0 0
    %1525 = vperm.xlu0 %1524, %v1299
    %v1526 = vpop.permute.xlu0 %1525
    %1529 = vset.pattern.permute.xlu0 0
    %1530 = vperm.xlu0 %1529, %v1300
    %v1531 = vpop.permute.xlu0 %1530
    %1534 = vset.pattern.permute.xlu0 0
    %1535 = vperm.xlu0 %1534, %v1301
    %v1536 = vpop.permute.xlu0 %1535
    %1539 = vset.pattern.permute.xlu0 0
    %1540 = vperm.xlu0 %1539, %v1302
    %v1541 = vpop.permute.xlu0 %1540
    %1544 = vset.pattern.permute.xlu0 0
    %1545 = vperm.xlu0 %1544, %v1303
    %v1546 = vpop.permute.xlu0 %1545
    %1549 = vset.pattern.permute.xlu0 0
    %1550 = vperm.xlu0 %1549, %v1304
    %v1551 = vpop.permute.xlu0 %1550
    %1554 = vset.pattern.permute.xlu0 0
    %1555 = vperm.xlu0 %1554, %v1305
    %v1556 = vpop.permute.xlu0 %1555
    %1559 = vset.pattern.permute.xlu0 0
    %1560 = vperm.xlu0 %1559, %v1306
    %v1561 = vpop.permute.xlu0 %1560
    %1564 = vset.pattern.permute.xlu0 0
    %1565 = vperm.xlu0 %1564, %v1307
    %v1566 = vpop.permute.xlu0 %1565
    %1569 = vset.pattern.permute.xlu0 0
    %1570 = vperm.xlu0 %1569, %v1308
    %v1571 = vpop.permute.xlu0 %1570
    %1574 = vset.pattern.permute.xlu0 0
    %1575 = vperm.xlu0 %1574, %v1309
    %v1576 = vpop.permute.xlu0 %1575
    %1579 = vset.pattern.permute.xlu0 0
    %1580 = vperm.xlu0 %1579, %v1310
    %v1581 = vpop.permute.xlu0 %1580
    %1584 = vset.pattern.permute.xlu0 0
    %1585 = vperm.xlu0 %1584, %v1311
    %v1586 = vpop.permute.xlu0 %1585
    %1589 = vset.pattern.permute.xlu0 0
    %1590 = vperm.xlu0 %1589, %v1312
    %v1591 = vpop.permute.xlu0 %1590
    %1594 = vset.pattern.permute.xlu0 0
    %1595 = vperm.xlu0 %1594, %v1313
    %v1596 = vpop.permute.xlu0 %1595
    %1599 = vset.pattern.permute.xlu0 0
    %1600 = vperm.xlu0 %1599, %v1314
    %v1601 = vpop.permute.xlu0 %1600
    %1604 = vset.pattern.permute.xlu0 0
    %1605 = vperm.xlu0 %1604, %v1315
    %v1606 = vpop.permute.xlu0 %1605
    %1609 = vset.pattern.permute.xlu0 0
    %1610 = vperm.xlu0 %1609, %v1316
    %v1611 = vpop.permute.xlu0 %1610
    %1614 = vset.pattern.permute.xlu0 0
    %1615 = vperm.xlu0 %1614, %v1317
    %v1616 = vpop.permute.xlu0 %1615
    %1619 = vset.pattern.permute.xlu0 0
    %1620 = vperm.xlu0 %1619, %v1318
    %v1621 = vpop.permute.xlu0 %1620
    %1624 = vset.pattern.permute.xlu0 0
    %1625 = vperm.xlu0 %1624, %v1319
    %v1626 = vpop.permute.xlu0 %1625
    %1629 = vset.pattern.permute.xlu0 0
    %1630 = vperm.xlu0 %1629, %v1320
    %v1631 = vpop.permute.xlu0 %1630
    %1634 = vset.pattern.permute.xlu0 0
    %1635 = vperm.xlu0 %1634, %v1321
    %v1636 = vpop.permute.xlu0 %1635
    %1639 = vset.pattern.permute.xlu0 0
    %1640 = vperm.xlu0 %1639, %v1322
    %v1641 = vpop.permute.xlu0 %1640
    %v1643 = vadd.f32 %v1195, %v1326
    %v1644 = vadd.f32 %v1196, %v1331
    %v1645 = vadd.f32 %v1197, %v1336
    %v1646 = vadd.f32 %v1198, %v1341
    %v1647 = vadd.f32 %v1199, %v1346
    %v1648 = vadd.f32 %v1200, %v1351
    %v1649 = vadd.f32 %v1201, %v1356
    %v1650 = vadd.f32 %v1202, %v1361
    %v1651 = vadd.f32 %v1203, %v1366
    %v1652 = vadd.f32 %v1204, %v1371
    %v1653 = vadd.f32 %v1205, %v1376
    %v1654 = vadd.f32 %v1206, %v1381
    %v1655 = vadd.f32 %v1207, %v1386
    %v1656 = vadd.f32 %v1208, %v1391
    %v1657 = vadd.f32 %v1209, %v1396
    %v1658 = vadd.f32 %v1210, %v1401
    %v1659 = vadd.f32 %v1211, %v1406
    %v1660 = vadd.f32 %v1212, %v1411
    %v1661 = vadd.f32 %v1213, %v1416
    %v1662 = vadd.f32 %v1214, %v1421
    %v1663 = vadd.f32 %v1215, %v1426
    %v1664 = vadd.f32 %v1216, %v1431
    %v1665 = vadd.f32 %v1217, %v1436
    %v1666 = vadd.f32 %v1218, %v1441
    %v1667 = vadd.f32 %v1219, %v1446
    %v1668 = vadd.f32 %v1220, %v1451
    %v1669 = vadd.f32 %v1221, %v1456
    %v1670 = vadd.f32 %v1222, %v1461
    %v1671 = vadd.f32 %v1223, %v1466
    %v1672 = vadd.f32 %v1224, %v1471
    %v1673 = vadd.f32 %v1225, %v1476
    %v1674 = vadd.f32 %v1226, %v1481
    %v1675 = vadd.f32 %v1227, %v1486
    %v1676 = vadd.f32 %v1228, %v1491
    %v1677 = vadd.f32 %v1229, %v1496
    %v1678 = vadd.f32 %v1230, %v1501
    %v1679 = vadd.f32 %v1231, %v1506
    %v1680 = vadd.f32 %v1232, %v1511
    %v1681 = vadd.f32 %v1233, %v1516
    %v1682 = vadd.f32 %v1234, %v1521
    %v1683 = vadd.f32 %v1235, %v1526
    %v1684 = vadd.f32 %v1236, %v1531
    %v1685 = vadd.f32 %v1237, %v1536
    %v1686 = vadd.f32 %v1238, %v1541
    %v1687 = vadd.f32 %v1239, %v1546
    %v1688 = vadd.f32 %v1240, %v1551
    %v1689 = vadd.f32 %v1241, %v1556
    %v1690 = vadd.f32 %v1242, %v1561
    %v1691 = vadd.f32 %v1243, %v1566
    %v1692 = vadd.f32 %v1244, %v1571
    %v1693 = vadd.f32 %v1245, %v1576
    %v1694 = vadd.f32 %v1246, %v1581
    %v1695 = vadd.f32 %v1247, %v1586
    %v1696 = vadd.f32 %v1248, %v1591
    %v1697 = vadd.f32 %v1249, %v1596
    %v1698 = vadd.f32 %v1250, %v1601
    %v1699 = vadd.f32 %v1251, %v1606
    %v1700 = vadd.f32 %v1252, %v1611
    %v1701 = vadd.f32 %v1253, %v1616
    %v1702 = vadd.f32 %v1254, %v1621
    %v1703 = vadd.f32 %v1255, %v1626
    %v1704 = vadd.f32 %v1256, %v1631
    %v1705 = vadd.f32 %v1257, %v1636
    %v1706 = vadd.f32 %v1258, %v1641
    %v1707 = vmax.f32 %v1643, 0.0
    %v1708 = vmax.f32 %v1644, 0.0
    %v1709 = vmax.f32 %v1645, 0.0
    %v1710 = vmax.f32 %v1646, 0.0
    %v1711 = vmax.f32 %v1647, 0.0
    %v1712 = vmax.f32 %v1648, 0.0
    %v1713 = vmax.f32 %v1649, 0.0
    %v1714 = vmax.f32 %v1650, 0.0
    %v1715 = vmax.f32 %v1651, 0.0
    %v1716 = vmax.f32 %v1652, 0.0
    %v1717 = vmax.f32 %v1653, 0.0
    %v1718 = vmax.f32 %v1654, 0.0
    %v1719 = vmax.f32 %v1655, 0.0
    %v1720 = vmax.f32 %v1656, 0.0
    %v1721 = vmax.f32 %v1657, 0.0
    %v1722 = vmax.f32 %v1658, 0.0
    %v1723 = vmax.f32 %v1659, 0.0
    %v1724 = vmax.f32 %v1660, 0.0
    %v1725 = vmax.f32 %v1661, 0.0
    %v1726 = vmax.f32 %v1662, 0.0
    %v1727 = vmax.f32 %v1663, 0.0
    %v1728 = vmax.f32 %v1664, 0.0
    %v1729 = vmax.f32 %v1665, 0.0
    %v1730 = vmax.f32 %v1666, 0.0
    %v1731 = vmax.f32 %v1667, 0.0
    %v1732 = vmax.f32 %v1668, 0.0
    %v1733 = vmax.f32 %v1669, 0.0
    %v1734 = vmax.f32 %v1670, 0.0
    %v1735 = vmax.f32 %v1671, 0.0
    %v1736 = vmax.f32 %v1672, 0.0
    %v1737 = vmax.f32 %v1673, 0.0
    %v1738 = vmax.f32 %v1674, 0.0
    %v1739 = vmax.f32 %v1675, 0.0
    %v1740 = vmax.f32 %v1676, 0.0
    %v1741 = vmax.f32 %v1677, 0.0
    %v1742 = vmax.f32 %v1678, 0.0
    %v1743 = vmax.f32 %v1679, 0.0
    %v1744 = vmax.f32 %v1680, 0.0
    %v1745 = vmax.f32 %v1681, 0.0
    %v1746 = vmax.f32 %v1682, 0.0
    %v1747 = vmax.f32 %v1683, 0.0
    %v1748 = vmax.f32 %v1684, 0.0
    %v1749 = vmax.f32 %v1685, 0.0
    %v1750 = vmax.f32 %v1686, 0.0
    %v1751 = vmax.f32 %v1687, 0.0
    %v1752 = vmax.f32 %v1688, 0.0
    %v1753 = vmax.f32 %v1689, 0.0
    %v1754 = vmax.f32 %v1690, 0.0
    %v1755 = vmax.f32 %v1691, 0.0
    %v1756 = vmax.f32 %v1692, 0.0
    %v1757 = vmax.f32 %v1693, 0.0
    %v1758 = vmax.f32 %v1694, 0.0
    %v1759 = vmax.f32 %v1695, 0.0
    %v1760 = vmax.f32 %v1696, 0.0
    %v1761 = vmax.f32 %v1697, 0.0
    %v1762 = vmax.f32 %v1698, 0.0
    %v1763 = vmax.f32 %v1699, 0.0
    %v1764 = vmax.f32 %v1700, 0.0
    %v1765 = vmax.f32 %v1701, 0.0
    %v1766 = vmax.f32 %v1702, 0.0
    %v1767 = vmax.f32 %v1703, 0.0
    %v1768 = vmax.f32 %v1704, 0.0
    %v1769 = vmax.f32 %v1705, 0.0
    %v1770 = vmax.f32 %v1706, 0.0
    %v1771 = vld [vmem:[%s3] sm:$0xff]
    %v1772 = vld [vmem:[%s3 + $0x8] sm:$0xff]
    %v1773 = vld [vmem:[%s3 + $0x10] sm:$0xff]
    %v1774 = vld [vmem:[%s3 + $0x18] sm:$0xff]
    %v1775 = vld [vmem:[%s3 + $0x20] sm:$0xff]
    %v1776 = vld [vmem:[%s3 + $0x28] sm:$0xff]
    %v1777 = vld [vmem:[%s3 + $0x30] sm:$0xff]
    %v1778 = vld [vmem:[%s3 + $0x38] sm:$0xff]
    %v1779 = vld [vmem:[%s3 + $0x40] sm:$0xff]
    %v1780 = vld [vmem:[%s3 + $0x48] sm:$0xff]
    %v1781 = vld [vmem:[%s3 + $0x50] sm:$0xff]
    %v1782 = vld [vmem:[%s3 + $0x58] sm:$0xff]
    %v1783 = vld [vmem:[%s3 + $0x60] sm:$0xff]
    %v1784 = vld [vmem:[%s3 + $0x68] sm:$0xff]
    %v1785 = vld [vmem:[%s3 + $0x70] sm:$0xff]
    %v1786 = vld [vmem:[%s3 + $0x78] sm:$0xff]
    %v1787 = vld [vmem:[%s3 + $0x80] sm:$0xff]
    %v1788 = vld [vmem:[%s3 + $0x88] sm:$0xff]
    %v1789 = vld [vmem:[%s3 + $0x90] sm:$0xff]
    %v1790 = vld [vmem:[%s3 + $0x98] sm:$0xff]
    %v1791 = vld [vmem:[%s3 + $0xa0] sm:$0xff]
    %v1792 = vld [vmem:[%s3 + $0xa8] sm:$0xff]
    %v1793 = vld [vmem:[%s3 + $0xb0] sm:$0xff]
    %v1794 = vld [vmem:[%s3 + $0xb8] sm:$0xff]
    %v1795 = vld [vmem:[%s3 + $0xc0] sm:$0xff]
    %v1796 = vld [vmem:[%s3 + $0xc8] sm:$0xff]
    %v1797 = vld [vmem:[%s3 + $0xd0] sm:$0xff]
    %v1798 = vld [vmem:[%s3 + $0xd8] sm:$0xff]
    %v1799 = vld [vmem:[%s3 + $0xe0] sm:$0xff]
    %v1800 = vld [vmem:[%s3 + $0xe8] sm:$0xff]
    %v1801 = vld [vmem:[%s3 + $0xf0] sm:$0xff]
    %v1802 = vld [vmem:[%s3 + $0xf8] sm:$0xff]
    %v1803 = vld [vmem:[%s3 + $0x100] sm:$0xff]
    %v1804 = vld [vmem:[%s3 + $0x108] sm:$0xff]
    %v1805 = vld [vmem:[%s3 + $0x110] sm:$0xff]
    %v1806 = vld [vmem:[%s3 + $0x118] sm:$0xff]
    %v1807 = vld [vmem:[%s3 + $0x120] sm:$0xff]
    %v1808 = vld [vmem:[%s3 + $0x128] sm:$0xff]
    %v1809 = vld [vmem:[%s3 + $0x130] sm:$0xff]
    %v1810 = vld [vmem:[%s3 + $0x138] sm:$0xff]
    %v1811 = vld [vmem:[%s3 + $0x140] sm:$0xff]
    %v1812 = vld [vmem:[%s3 + $0x148] sm:$0xff]
    %v1813 = vld [vmem:[%s3 + $0x150] sm:$0xff]
    %v1814 = vld [vmem:[%s3 + $0x158] sm:$0xff]
    %v1815 = vld [vmem:[%s3 + $0x160] sm:$0xff]
    %v1816 = vld [vmem:[%s3 + $0x168] sm:$0xff]
    %v1817 = vld [vmem:[%s3 + $0x170] sm:$0xff]
    %v1818 = vld [vmem:[%s3 + $0x178] sm:$0xff]
    %v1819 = vld [vmem:[%s3 + $0x180] sm:$0xff]
    %v1820 = vld [vmem:[%s3 + $0x188] sm:$0xff]
    %v1821 = vld [vmem:[%s3 + $0x190] sm:$0xff]
    %v1822 = vld [vmem:[%s3 + $0x198] sm:$0xff]
    %v1823 = vld [vmem:[%s3 + $0x1a0] sm:$0xff]
    %v1824 = vld [vmem:[%s3 + $0x1a8] sm:$0xff]
    %v1825 = vld [vmem:[%s3 + $0x1b0] sm:$0xff]
    %v1826 = vld [vmem:[%s3 + $0x1b8] sm:$0xff]
    %v1827 = vld [vmem:[%s3 + $0x1c0] sm:$0xff]
    %v1828 = vld [vmem:[%s3 + $0x1c8] sm:$0xff]
    %v1829 = vld [vmem:[%s3 + $0x1d0] sm:$0xff]
    %v1830 = vld [vmem:[%s3 + $0x1d8] sm:$0xff]
    %v1831 = vld [vmem:[%s3 + $0x1e0] sm:$0xff]
    %v1832 = vld [vmem:[%s3 + $0x1e8] sm:$0xff]
    %v1833 = vld [vmem:[%s3 + $0x1f0] sm:$0xff]
    %v1834 = vld [vmem:[%s3 + $0x1f8] sm:$0xff]
    %v1835 = vld [vmem:[%s3 + $0x200] sm:$0xff]
    %v1836 = vld [vmem:[%s3 + $0x208] sm:$0xff]
    %v1837 = vld [vmem:[%s3 + $0x210] sm:$0xff]
    %v1838 = vld [vmem:[%s3 + $0x218] sm:$0xff]
    %v1839 = vld [vmem:[%s3 + $0x220] sm:$0xff]
    %v1840 = vld [vmem:[%s3 + $0x228] sm:$0xff]
    %v1841 = vld [vmem:[%s3 + $0x230] sm:$0xff]
    %v1842 = vld [vmem:[%s3 + $0x238] sm:$0xff]
    %v1843 = vld [vmem:[%s3 + $0x240] sm:$0xff]
    %v1844 = vld [vmem:[%s3 + $0x248] sm:$0xff]
    %v1845 = vld [vmem:[%s3 + $0x250] sm:$0xff]
    %v1846 = vld [vmem:[%s3 + $0x258] sm:$0xff]
    %v1847 = vld [vmem:[%s3 + $0x260] sm:$0xff]
    %v1848 = vld [vmem:[%s3 + $0x268] sm:$0xff]
    %v1849 = vld [vmem:[%s3 + $0x270] sm:$0xff]
    %v1850 = vld [vmem:[%s3 + $0x278] sm:$0xff]
    %v1851 = vld [vmem:[%s3 + $0x280] sm:$0xff]
    %v1852 = vld [vmem:[%s3 + $0x288] sm:$0xff]
    %v1853 = vld [vmem:[%s3 + $0x290] sm:$0xff]
    %v1854 = vld [vmem:[%s3 + $0x298] sm:$0xff]
    %v1855 = vld [vmem:[%s3 + $0x2a0] sm:$0xff]
    %v1856 = vld [vmem:[%s3 + $0x2a8] sm:$0xff]
    %v1857 = vld [vmem:[%s3 + $0x2b0] sm:$0xff]
    %v1858 = vld [vmem:[%s3 + $0x2b8] sm:$0xff]
    %v1859 = vld [vmem:[%s3 + $0x2c0] sm:$0xff]
    %v1860 = vld [vmem:[%s3 + $0x2c8] sm:$0xff]
    %v1861 = vld [vmem:[%s3 + $0x2d0] sm:$0xff]
    %v1862 = vld [vmem:[%s3 + $0x2d8] sm:$0xff]
    %v1863 = vld [vmem:[%s3 + $0x2e0] sm:$0xff]
    %v1864 = vld [vmem:[%s3 + $0x2e8] sm:$0xff]
    %v1865 = vld [vmem:[%s3 + $0x2f0] sm:$0xff]
    %v1866 = vld [vmem:[%s3 + $0x2f8] sm:$0xff]
    %v1867 = vpack.c.bf16 %v1708, %v1707
    %v1868 = vpack.c.bf16 %v1710, %v1709
    %v1869 = vpack.c.bf16 %v1712, %v1711
    %v1870 = vpack.c.bf16 %v1714, %v1713
    %v1871 = vpack.c.bf16 %v1716, %v1715
    %v1872 = vpack.c.bf16 %v1718, %v1717
    %v1873 = vpack.c.bf16 %v1720, %v1719
    %v1874 = vpack.c.bf16 %v1722, %v1721
    %v1875 = vpack.c.bf16 %v1724, %v1723
    %v1876 = vpack.c.bf16 %v1726, %v1725
    %v1877 = vpack.c.bf16 %v1728, %v1727
    %v1878 = vpack.c.bf16 %v1730, %v1729
    %v1879 = vpack.c.bf16 %v1732, %v1731
    %v1880 = vpack.c.bf16 %v1734, %v1733
    %v1881 = vpack.c.bf16 %v1736, %v1735
    %v1882 = vpack.c.bf16 %v1738, %v1737
    %v1883 = vpack.c.bf16 %v1740, %v1739
    %v1884 = vpack.c.bf16 %v1742, %v1741
    %v1885 = vpack.c.bf16 %v1744, %v1743
    %v1886 = vpack.c.bf16 %v1746, %v1745
    %v1887 = vpack.c.bf16 %v1748, %v1747
    %v1888 = vpack.c.bf16 %v1750, %v1749
    %v1889 = vpack.c.bf16 %v1752, %v1751
    %v1890 = vpack.c.bf16 %v1754, %v1753
    %v1891 = vpack.c.bf16 %v1756, %v1755
    %v1892 = vpack.c.bf16 %v1758, %v1757
    %v1893 = vpack.c.bf16 %v1760, %v1759
    %v1894 = vpack.c.bf16 %v1762, %v1761
    %v1895 = vpack.c.bf16 %v1764, %v1763
    %v1896 = vpack.c.bf16 %v1766, %v1765
    %v1897 = vpack.c.bf16 %v1768, %v1767
    %v1898 = vpack.c.bf16 %v1770, %v1769
    %v1899 = vld [vmem:[%s4] sm:$0xff]
    %v1900 = vld [vmem:[%s4 + $0x8] sm:$0xff]
    %v1901 = vld [vmem:[%s4 + $0x10] sm:$0xff]
    %v1902 = vld [vmem:[%s4 + $0x18] sm:$0xff]
    %v1903 = vld [vmem:[%s4 + $0x20] sm:$0xff]
    %v1904 = vld [vmem:[%s4 + $0x28] sm:$0xff]
    %v1905 = vld [vmem:[%s4 + $0x30] sm:$0xff]
    %v1906 = vld [vmem:[%s4 + $0x38] sm:$0xff]
    %v1907 = vld [vmem:[%s4 + $0x40] sm:$0xff]
    %v1908 = vld [vmem:[%s4 + $0x48] sm:$0xff]
    %v1909 = vld [vmem:[%s4 + $0x50] sm:$0xff]
    %v1910 = vld [vmem:[%s4 + $0x58] sm:$0xff]
    %v1911 = vld [vmem:[%s4 + $0x60] sm:$0xff]
    %v1912 = vld [vmem:[%s4 + $0x68] sm:$0xff]
    %v1913 = vld [vmem:[%s4 + $0x70] sm:$0xff]
    %v1914 = vld [vmem:[%s4 + $0x78] sm:$0xff]
    %v1915 = vld [vmem:[%s4 + $0x80] sm:$0xff]
    %v1916 = vld [vmem:[%s4 + $0x88] sm:$0xff]
    %v1917 = vld [vmem:[%s4 + $0x90] sm:$0xff]
    %v1918 = vld [vmem:[%s4 + $0x98] sm:$0xff]
    %v1919 = vld [vmem:[%s4 + $0xa0] sm:$0xff]
    %v1920 = vld [vmem:[%s4 + $0xa8] sm:$0xff]
    %v1921 = vld [vmem:[%s4 + $0xb0] sm:$0xff]
    %v1922 = vld [vmem:[%s4 + $0xb8] sm:$0xff]
    %v1923 = vld [vmem:[%s4 + $0xc0] sm:$0xff]
    %v1924 = vld [vmem:[%s4 + $0xc8] sm:$0xff]
    %v1925 = vld [vmem:[%s4 + $0xd0] sm:$0xff]
    %v1926 = vld [vmem:[%s4 + $0xd8] sm:$0xff]
    %v1927 = vld [vmem:[%s4 + $0xe0] sm:$0xff]
    %v1928 = vld [vmem:[%s4 + $0xe8] sm:$0xff]
    %v1929 = vld [vmem:[%s4 + $0xf0] sm:$0xff]
    %v1930 = vld [vmem:[%s4 + $0xf8] sm:$0xff]
    %v1931 = vld [vmem:[%s4 + $0x100] sm:$0xff]
    %v1932 = vld [vmem:[%s4 + $0x108] sm:$0xff]
    %v1933 = vld [vmem:[%s4 + $0x110] sm:$0xff]
    %v1934 = vld [vmem:[%s4 + $0x118] sm:$0xff]
    %v1935 = vld [vmem:[%s4 + $0x120] sm:$0xff]
    %v1936 = vld [vmem:[%s4 + $0x128] sm:$0xff]
    %v1937 = vld [vmem:[%s4 + $0x130] sm:$0xff]
    %v1938 = vld [vmem:[%s4 + $0x138] sm:$0xff]
    %v1939 = vld [vmem:[%s4 + $0x140] sm:$0xff]
    %v1940 = vld [vmem:[%s4 + $0x148] sm:$0xff]
    %v1941 = vld [vmem:[%s4 + $0x150] sm:$0xff]
    %v1942 = vld [vmem:[%s4 + $0x158] sm:$0xff]
    %v1943 = vld [vmem:[%s4 + $0x160] sm:$0xff]
    %v1944 = vld [vmem:[%s4 + $0x168] sm:$0xff]
    %v1945 = vld [vmem:[%s4 + $0x170] sm:$0xff]
    %v1946 = vld [vmem:[%s4 + $0x178] sm:$0xff]
    %1948 = vset.pattern.permute.xlu0 0
    %1949 = vperm.xlu0 %1948, %v1899
    %v1950 = vpop.permute.xlu0 %1949
    %1953 = vset.pattern.permute.xlu0 0
    %1954 = vperm.xlu0 %1953, %v1900
    %v1955 = vpop.permute.xlu0 %1954
    %1958 = vset.pattern.permute.xlu0 0
    %1959 = vperm.xlu0 %1958, %v1901
    %v1960 = vpop.permute.xlu0 %1959
    %1963 = vset.pattern.permute.xlu0 0
    %1964 = vperm.xlu0 %1963, %v1902
    %v1965 = vpop.permute.xlu0 %1964
    %1968 = vset.pattern.permute.xlu0 0
    %1969 = vperm.xlu0 %1968, %v1903
    %v1970 = vpop.permute.xlu0 %1969
    %1973 = vset.pattern.permute.xlu0 0
    %1974 = vperm.xlu0 %1973, %v1904
    %v1975 = vpop.permute.xlu0 %1974
    %1978 = vset.pattern.permute.xlu0 0
    %1979 = vperm.xlu0 %1978, %v1905
    %v1980 = vpop.permute.xlu0 %1979
    %1983 = vset.pattern.permute.xlu0 0
    %1984 = vperm.xlu0 %1983, %v1906
    %v1985 = vpop.permute.xlu0 %1984
    %1988 = vset.pattern.permute.xlu0 0
    %1989 = vperm.xlu0 %1988, %v1907
    %v1990 = vpop.permute.xlu0 %1989
    %1993 = vset.pattern.permute.xlu0 0
    %1994 = vperm.xlu0 %1993, %v1908
    %v1995 = vpop.permute.xlu0 %1994
    %1998 = vset.pattern.permute.xlu0 0
    %1999 = vperm.xlu0 %1998, %v1909
    %v2000 = vpop.permute.xlu0 %1999
    %2003 = vset.pattern.permute.xlu0 0
    %2004 = vperm.xlu0 %2003, %v1910
    %v2005 = vpop.permute.xlu0 %2004
    %2008 = vset.pattern.permute.xlu0 0
    %2009 = vperm.xlu0 %2008, %v1911
    %v2010 = vpop.permute.xlu0 %2009
    %2013 = vset.pattern.permute.xlu0 0
    %2014 = vperm.xlu0 %2013, %v1912
    %v2015 = vpop.permute.xlu0 %2014
    %2018 = vset.pattern.permute.xlu0 0
    %2019 = vperm.xlu0 %2018, %v1913
    %v2020 = vpop.permute.xlu0 %2019
    %2023 = vset.pattern.permute.xlu0 0
    %2024 = vperm.xlu0 %2023, %v1914
    %v2025 = vpop.permute.xlu0 %2024
    %2028 = vset.pattern.permute.xlu0 0
    %2029 = vperm.xlu0 %2028, %v1915
    %v2030 = vpop.permute.xlu0 %2029
    %2033 = vset.pattern.permute.xlu0 0
    %2034 = vperm.xlu0 %2033, %v1916
    %v2035 = vpop.permute.xlu0 %2034
    %2038 = vset.pattern.permute.xlu0 0
    %2039 = vperm.xlu0 %2038, %v1917
    %v2040 = vpop.permute.xlu0 %2039
    %2043 = vset.pattern.permute.xlu0 0
    %2044 = vperm.xlu0 %2043, %v1918
    %v2045 = vpop.permute.xlu0 %2044
    %2048 = vset.pattern.permute.xlu0 0
    %2049 = vperm.xlu0 %2048, %v1919
    %v2050 = vpop.permute.xlu0 %2049
    %2053 = vset.pattern.permute.xlu0 0
    %2054 = vperm.xlu0 %2053, %v1920
    %v2055 = vpop.permute.xlu0 %2054
    %2058 = vset.pattern.permute.xlu0 0
    %2059 = vperm.xlu0 %2058, %v1921
    %v2060 = vpop.permute.xlu0 %2059
    %2063 = vset.pattern.permute.xlu0 0
    %2064 = vperm.xlu0 %2063, %v1922
    %v2065 = vpop.permute.xlu0 %2064
    %2068 = vset.pattern.permute.xlu0 0
    %2069 = vperm.xlu0 %2068, %v1923
    %v2070 = vpop.permute.xlu0 %2069
    %2073 = vset.pattern.permute.xlu0 0
    %2074 = vperm.xlu0 %2073, %v1924
    %v2075 = vpop.permute.xlu0 %2074
    %2078 = vset.pattern.permute.xlu0 0
    %2079 = vperm.xlu0 %2078, %v1925
    %v2080 = vpop.permute.xlu0 %2079
    %2083 = vset.pattern.permute.xlu0 0
    %2084 = vperm.xlu0 %2083, %v1926
    %v2085 = vpop.permute.xlu0 %2084
    %2088 = vset.pattern.permute.xlu0 0
    %2089 = vperm.xlu0 %2088, %v1927
    %v2090 = vpop.permute.xlu0 %2089
    %2093 = vset.pattern.permute.xlu0 0
    %2094 = vperm.xlu0 %2093, %v1928
    %v2095 = vpop.permute.xlu0 %2094
    %2098 = vset.pattern.permute.xlu0 0
    %2099 = vperm.xlu0 %2098, %v1929
    %v2100 = vpop.permute.xlu0 %2099
    %2103 = vset.pattern.permute.xlu0 0
    %2104 = vperm.xlu0 %2103, %v1930
    %v2105 = vpop.permute.xlu0 %2104
    %2108 = vset.pattern.permute.xlu0 0
    %2109 = vperm.xlu0 %2108, %v1931
    %v2110 = vpop.permute.xlu0 %2109
    %2113 = vset.pattern.permute.xlu0 0
    %2114 = vperm.xlu0 %2113, %v1932
    %v2115 = vpop.permute.xlu0 %2114
    %2118 = vset.pattern.permute.xlu0 0
    %2119 = vperm.xlu0 %2118, %v1933
    %v2120 = vpop.permute.xlu0 %2119
    %2123 = vset.pattern.permute.xlu0 0
    %2124 = vperm.xlu0 %2123, %v1934
    %v2125 = vpop.permute.xlu0 %2124
    %2128 = vset.pattern.permute.xlu0 0
    %2129 = vperm.xlu0 %2128, %v1935
    %v2130 = vpop.permute.xlu0 %2129
    %2133 = vset.pattern.permute.xlu0 0
    %2134 = vperm.xlu0 %2133, %v1936
    %v2135 = vpop.permute.xlu0 %2134
    %2138 = vset.pattern.permute.xlu0 0
    %2139 = vperm.xlu0 %2138, %v1937
    %v2140 = vpop.permute.xlu0 %2139
    %2143 = vset.pattern.permute.xlu0 0
    %2144 = vperm.xlu0 %2143, %v1938
    %v2145 = vpop.permute.xlu0 %2144
    %2148 = vset.pattern.permute.xlu0 0
    %2149 = vperm.xlu0 %2148, %v1939
    %v2150 = vpop.permute.xlu0 %2149
    %2153 = vset.pattern.permute.xlu0 0
    %2154 = vperm.xlu0 %2153, %v1940
    %v2155 = vpop.permute.xlu0 %2154
    %2158 = vset.pattern.permute.xlu0 0
    %2159 = vperm.xlu0 %2158, %v1941
    %v2160 = vpop.permute.xlu0 %2159
    %2163 = vset.pattern.permute.xlu0 0
    %2164 = vperm.xlu0 %2163, %v1942
    %v2165 = vpop.permute.xlu0 %2164
    %2168 = vset.pattern.permute.xlu0 0
    %2169 = vperm.xlu0 %2168, %v1943
    %v2170 = vpop.permute.xlu0 %2169
    %2173 = vset.pattern.permute.xlu0 0
    %2174 = vperm.xlu0 %2173, %v1944
    %v2175 = vpop.permute.xlu0 %2174
    %2178 = vset.pattern.permute.xlu0 0
    %2179 = vperm.xlu0 %2178, %v1945
    %v2180 = vpop.permute.xlu0 %2179
    %2183 = vset.pattern.permute.xlu0 0
    %2184 = vperm.xlu0 %2183, %v1946
    %v2185 = vpop.permute.xlu0 %2184
    %v2283 = vunpack.c.l.b16 %v1771
    %v2284 = vunpack.c.h.b16 %v1771
    %v2285 = vunpack.c.l.b16 %v1772
    %v2286 = vunpack.c.h.b16 %v1772
    %v2287 = vunpack.c.l.b16 %v1773
    %v2288 = vunpack.c.h.b16 %v1773
    %v2289 = vunpack.c.l.b16 %v1774
    %v2290 = vunpack.c.h.b16 %v1774
    %v2291 = vunpack.c.l.b16 %v1775
    %v2292 = vunpack.c.h.b16 %v1775
    %v2293 = vunpack.c.l.b16 %v1776
    %v2294 = vunpack.c.h.b16 %v1776
    %v2295 = vunpack.c.l.b16 %v1777
    %v2296 = vunpack.c.h.b16 %v1777
    %v2297 = vunpack.c.l.b16 %v1778
    %v2298 = vunpack.c.h.b16 %v1778
    %v2299 = vunpack.c.l.b16 %v1779
    %v2300 = vunpack.c.h.b16 %v1779
    %v2301 = vunpack.c.l.b16 %v1780
    %v2302 = vunpack.c.h.b16 %v1780
    %v2303 = vunpack.c.l.b16 %v1781
    %v2304 = vunpack.c.h.b16 %v1781
    %v2305 = vunpack.c.l.b16 %v1782
    %v2306 = vunpack.c.h.b16 %v1782
    %v2307 = vunpack.c.l.b16 %v1783
    %v2308 = vunpack.c.h.b16 %v1783
    %v2309 = vunpack.c.l.b16 %v1784
    %v2310 = vunpack.c.h.b16 %v1784
    %v2311 = vunpack.c.l.b16 %v1785
    %v2312 = vunpack.c.h.b16 %v1785
    %v2313 = vunpack.c.l.b16 %v1786
    %v2314 = vunpack.c.h.b16 %v1786
    %v2315 = vunpack.c.l.b16 %v1787
    %v2316 = vunpack.c.h.b16 %v1787
    %v2317 = vunpack.c.l.b16 %v1788
    %v2318 = vunpack.c.h.b16 %v1788
    %v2319 = vunpack.c.l.b16 %v1789
    %v2320 = vunpack.c.h.b16 %v1789
    %v2321 = vunpack.c.l.b16 %v1790
    %v2322 = vunpack.c.h.b16 %v1790
    %v2323 = vunpack.c.l.b16 %v1791
    %v2324 = vunpack.c.h.b16 %v1791
    %v2325 = vunpack.c.l.b16 %v1792
    %v2326 = vunpack.c.h.b16 %v1792
    %v2327 = vunpack.c.l.b16 %v1793
    %v2328 = vunpack.c.h.b16 %v1793
    %v2329 = vunpack.c.l.b16 %v1794
    %v2330 = vunpack.c.h.b16 %v1794
    %v2331 = vunpack.c.l.b16 %v1795
    %v2332 = vunpack.c.h.b16 %v1795
    %v2333 = vunpack.c.l.b16 %v1796
    %v2334 = vunpack.c.h.b16 %v1796
    %v2335 = vunpack.c.l.b16 %v1797
    %v2336 = vunpack.c.h.b16 %v1797
    %v2337 = vunpack.c.l.b16 %v1798
    %v2338 = vunpack.c.h.b16 %v1798
    %v2339 = vunpack.c.l.b16 %v1799
    %v2340 = vunpack.c.h.b16 %v1799
    %v2341 = vunpack.c.l.b16 %v1800
    %v2342 = vunpack.c.h.b16 %v1800
    %v2343 = vunpack.c.l.b16 %v1801
    %v2344 = vunpack.c.h.b16 %v1801
    %v2345 = vunpack.c.l.b16 %v1802
    %v2346 = vunpack.c.h.b16 %v1802
    %v2347 = vunpack.c.l.b16 %v1803
    %v2348 = vunpack.c.h.b16 %v1803
    %v2349 = vunpack.c.l.b16 %v1804
    %v2350 = vunpack.c.h.b16 %v1804
    %v2351 = vunpack.c.l.b16 %v1805
    %v2352 = vunpack.c.h.b16 %v1805
    %v2353 = vunpack.c.l.b16 %v1806
    %v2354 = vunpack.c.h.b16 %v1806
    %v2355 = vunpack.c.l.b16 %v1807
    %v2356 = vunpack.c.h.b16 %v1807
    %v2357 = vunpack.c.l.b16 %v1808
    %v2358 = vunpack.c.h.b16 %v1808
    %v2359 = vunpack.c.l.b16 %v1809
    %v2360 = vunpack.c.h.b16 %v1809
    %v2361 = vunpack.c.l.b16 %v1810
    %v2362 = vunpack.c.h.b16 %v1810
    %v2363 = vunpack.c.l.b16 %v1811
    %v2364 = vunpack.c.h.b16 %v1811
    %v2365 = vunpack.c.l.b16 %v1812
    %v2366 = vunpack.c.h.b16 %v1812
    %v2367 = vunpack.c.l.b16 %v1813
    %v2368 = vunpack.c.h.b16 %v1813
    %v2369 = vunpack.c.l.b16 %v1814
    %v2370 = vunpack.c.h.b16 %v1814
    %v2371 = vunpack.c.l.b16 %v1815
    %v2372 = vunpack.c.h.b16 %v1815
    %v2373 = vunpack.c.l.b16 %v1816
    %v2374 = vunpack.c.h.b16 %v1816
    %v2375 = vunpack.c.l.b16 %v1817
    %v2376 = vunpack.c.h.b16 %v1817
    %v2377 = vunpack.c.l.b16 %v1818
    %v2378 = vunpack.c.h.b16 %v1818
    %v2379 = vunpack.c.l.b16 %v1819
    %v2380 = vunpack.c.h.b16 %v1819
    %v2381 = vunpack.c.l.b16 %v1820
    %v2382 = vunpack.c.h.b16 %v1820
    %v2383 = vunpack.c.l.b16 %v1821
    %v2384 = vunpack.c.h.b16 %v1821
    %v2385 = vunpack.c.l.b16 %v1822
    %v2386 = vunpack.c.h.b16 %v1822
    %v2387 = vunpack.c.l.b16 %v1823
    %v2388 = vunpack.c.h.b16 %v1823
    %v2389 = vunpack.c.l.b16 %v1824
    %v2390 = vunpack.c.h.b16 %v1824
    %v2391 = vunpack.c.l.b16 %v1825
    %v2392 = vunpack.c.h.b16 %v1825
    %v2393 = vunpack.c.l.b16 %v1826
    %v2394 = vunpack.c.h.b16 %v1826
    %v2395 = vunpack.c.l.b16 %v1827
    %v2396 = vunpack.c.h.b16 %v1827
    %v2397 = vunpack.c.l.b16 %v1828
    %v2398 = vunpack.c.h.b16 %v1828
    %v2399 = vunpack.c.l.b16 %v1829
    %v2400 = vunpack.c.h.b16 %v1829
    %v2401 = vunpack.c.l.b16 %v1830
    %v2402 = vunpack.c.h.b16 %v1830
    %v2403 = vunpack.c.l.b16 %v1831
    %v2404 = vunpack.c.h.b16 %v1831
    %v2405 = vunpack.c.l.b16 %v1832
    %v2406 = vunpack.c.h.b16 %v1832
    %v2407 = vunpack.c.l.b16 %v1833
    %v2408 = vunpack.c.h.b16 %v1833
    %v2409 = vunpack.c.l.b16 %v1834
    %v2410 = vunpack.c.h.b16 %v1834
    %v2411 = vunpack.c.l.b16 %v1835
    %v2412 = vunpack.c.h.b16 %v1835
    %v2413 = vunpack.c.l.b16 %v1836
    %v2414 = vunpack.c.h.b16 %v1836
    %v2415 = vunpack.c.l.b16 %v1837
    %v2416 = vunpack.c.h.b16 %v1837
    %v2417 = vunpack.c.l.b16 %v1838
    %v2418 = vunpack.c.h.b16 %v1838
    %v2419 = vunpack.c.l.b16 %v1839
    %v2420 = vunpack.c.h.b16 %v1839
    %v2421 = vunpack.c.l.b16 %v1840
    %v2422 = vunpack.c.h.b16 %v1840
    %v2423 = vunpack.c.l.b16 %v1841
    %v2424 = vunpack.c.h.b16 %v1841
    %v2425 = vunpack.c.l.b16 %v1842
    %v2426 = vunpack.c.h.b16 %v1842
    %v2427 = vunpack.c.l.b16 %v1843
    %v2428 = vunpack.c.h.b16 %v1843
    %v2429 = vunpack.c.l.b16 %v1844
    %v2430 = vunpack.c.h.b16 %v1844
    %v2431 = vunpack.c.l.b16 %v1845
    %v2432 = vunpack.c.h.b16 %v1845
    %v2433 = vunpack.c.l.b16 %v1846
    %v2434 = vunpack.c.h.b16 %v1846
    %v2435 = vunpack.c.l.b16 %v1847
    %v2436 = vunpack.c.h.b16 %v1847
    %v2437 = vunpack.c.l.b16 %v1848
    %v2438 = vunpack.c.h.b16 %v1848
    %v2439 = vunpack.c.l.b16 %v1849
    %v2440 = vunpack.c.h.b16 %v1849
    %v2441 = vunpack.c.l.b16 %v1850
    %v2442 = vunpack.c.h.b16 %v1850
    %v2443 = vunpack.c.l.b16 %v1851
    %v2444 = vunpack.c.h.b16 %v1851
    %v2445 = vunpack.c.l.b16 %v1852
    %v2446 = vunpack.c.h.b16 %v1852
    %v2447 = vunpack.c.l.b16 %v1853
    %v2448 = vunpack.c.h.b16 %v1853
    %v2449 = vunpack.c.l.b16 %v1854
    %v2450 = vunpack.c.h.b16 %v1854
    %v2451 = vunpack.c.l.b16 %v1855
    %v2452 = vunpack.c.h.b16 %v1855
    %v2453 = vunpack.c.l.b16 %v1856
    %v2454 = vunpack.c.h.b16 %v1856
    %v2455 = vunpack.c.l.b16 %v1857
    %v2456 = vunpack.c.h.b16 %v1857
    %v2457 = vunpack.c.l.b16 %v1858
    %v2458 = vunpack.c.h.b16 %v1858
    %v2459 = vunpack.c.l.b16 %v1859
    %v2460 = vunpack.c.h.b16 %v1859
    %v2461 = vunpack.c.l.b16 %v1860
    %v2462 = vunpack.c.h.b16 %v1860
    %v2463 = vunpack.c.l.b16 %v1861
    %v2464 = vunpack.c.h.b16 %v1861
    %v2465 = vunpack.c.l.b16 %v1862
    %v2466 = vunpack.c.h.b16 %v1862
    %v2467 = vunpack.c.l.b16 %v1863
    %v2468 = vunpack.c.h.b16 %v1863
    %v2469 = vunpack.c.l.b16 %v1864
    %v2470 = vunpack.c.h.b16 %v1864
    %v2471 = vunpack.c.l.b16 %v1865
    %v2472 = vunpack.c.h.b16 %v1865
    %v2473 = vunpack.c.l.b16 %v1866
    %v2474 = vunpack.c.h.b16 %v1866
    %v2475 = vpack.c.b16 %v2287, %v2283
    %v2476 = vpack.c.b16 %v2288, %v2284
    %v2477 = vpack.c.b16 %v2289, %v2285
    %v2478 = vpack.c.b16 %v2290, %v2286
    %v2479 = vpack.c.b16 %v2295, %v2291
    %v2480 = vpack.c.b16 %v2296, %v2292
    %v2481 = vpack.c.b16 %v2297, %v2293
    %v2482 = vpack.c.b16 %v2298, %v2294
    %v2483 = vpack.c.b16 %v2303, %v2299
    %v2484 = vpack.c.b16 %v2304, %v2300
    %v2485 = vpack.c.b16 %v2305, %v2301
    %v2486 = vpack.c.b16 %v2306, %v2302
    %v2487 = vpack.c.b16 %v2311, %v2307
    %v2488 = vpack.c.b16 %v2312, %v2308
    %v2489 = vpack.c.b16 %v2313, %v2309
    %v2490 = vpack.c.b16 %v2314, %v2310
    %v2491 = vpack.c.b16 %v2319, %v2315
    %v2492 = vpack.c.b16 %v2320, %v2316
    %v2493 = vpack.c.b16 %v2321, %v2317
    %v2494 = vpack.c.b16 %v2322, %v2318
    %v2495 = vpack.c.b16 %v2327, %v2323
    %v2496 = vpack.c.b16 %v2328, %v2324
    %v2497 = vpack.c.b16 %v2329, %v2325
    %v2498 = vpack.c.b16 %v2330, %v2326
    %v2499 = vpack.c.b16 %v2335, %v2331
    %v2500 = vpack.c.b16 %v2336, %v2332
    %v2501 = vpack.c.b16 %v2337, %v2333
    %v2502 = vpack.c.b16 %v2338, %v2334
    %v2503 = vpack.c.b16 %v2343, %v2339
    %v2504 = vpack.c.b16 %v2344, %v2340
    %v2505 = vpack.c.b16 %v2345, %v2341
    %v2506 = vpack.c.b16 %v2346, %v2342
    %v2507 = vpack.c.b16 %v2351, %v2347
    %v2508 = vpack.c.b16 %v2352, %v2348
    %v2509 = vpack.c.b16 %v2353, %v2349
    %v2510 = vpack.c.b16 %v2354, %v2350
    %v2511 = vpack.c.b16 %v2359, %v2355
    %v2512 = vpack.c.b16 %v2360, %v2356
    %v2513 = vpack.c.b16 %v2361, %v2357
    %v2514 = vpack.c.b16 %v2362, %v2358
    %v2515 = vpack.c.b16 %v2367, %v2363
    %v2516 = vpack.c.b16 %v2368, %v2364
    %v2517 = vpack.c.b16 %v2369, %v2365
    %v2518 = vpack.c.b16 %v2370, %v2366
    %v2519 = vpack.c.b16 %v2375, %v2371
    %v2520 = vpack.c.b16 %v2376, %v2372
    %v2521 = vpack.c.b16 %v2377, %v2373
    %v2522 = vpack.c.b16 %v2378, %v2374
    %v2523 = vpack.c.b16 %v2383, %v2379
    %v2524 = vpack.c.b16 %v2384, %v2380
    %v2525 = vpack.c.b16 %v2385, %v2381
    %v2526 = vpack.c.b16 %v2386, %v2382
    %v2527 = vpack.c.b16 %v2391, %v2387
    %v2528 = vpack.c.b16 %v2392, %v2388
    %v2529 = vpack.c.b16 %v2393, %v2389
    %v2530 = vpack.c.b16 %v2394, %v2390
    %v2531 = vpack.c.b16 %v2399, %v2395
    %v2532 = vpack.c.b16 %v2400, %v2396
    %v2533 = vpack.c.b16 %v2401, %v2397
    %v2534 = vpack.c.b16 %v2402, %v2398
    %v2535 = vpack.c.b16 %v2407, %v2403
    %v2536 = vpack.c.b16 %v2408, %v2404
    %v2537 = vpack.c.b16 %v2409, %v2405
    %v2538 = vpack.c.b16 %v2410, %v2406
    %v2539 = vpack.c.b16 %v2415, %v2411
    %v2540 = vpack.c.b16 %v2416, %v2412
    %v2541 = vpack.c.b16 %v2417, %v2413
    %v2542 = vpack.c.b16 %v2418, %v2414
    %v2543 = vpack.c.b16 %v2423, %v2419
    %v2544 = vpack.c.b16 %v2424, %v2420
    %v2545 = vpack.c.b16 %v2425, %v2421
    %v2546 = vpack.c.b16 %v2426, %v2422
    %v2547 = vpack.c.b16 %v2431, %v2427
    %v2548 = vpack.c.b16 %v2432, %v2428
    %v2549 = vpack.c.b16 %v2433, %v2429
    %v2550 = vpack.c.b16 %v2434, %v2430
    %v2551 = vpack.c.b16 %v2439, %v2435
    %v2552 = vpack.c.b16 %v2440, %v2436
    %v2553 = vpack.c.b16 %v2441, %v2437
    %v2554 = vpack.c.b16 %v2442, %v2438
    %v2555 = vpack.c.b16 %v2447, %v2443
    %v2556 = vpack.c.b16 %v2448, %v2444
    %v2557 = vpack.c.b16 %v2449, %v2445
    %v2558 = vpack.c.b16 %v2450, %v2446
    %v2559 = vpack.c.b16 %v2455, %v2451
    %v2560 = vpack.c.b16 %v2456, %v2452
    %v2561 = vpack.c.b16 %v2457, %v2453
    %v2562 = vpack.c.b16 %v2458, %v2454
    %v2563 = vpack.c.b16 %v2463, %v2459
    %v2564 = vpack.c.b16 %v2464, %v2460
    %v2565 = vpack.c.b16 %v2465, %v2461
    %v2566 = vpack.c.b16 %v2466, %v2462
    %v2567 = vpack.c.b16 %v2471, %v2467
    %v2568 = vpack.c.b16 %v2472, %v2468
    %v2569 = vpack.c.b16 %v2473, %v2469
    %v2570 = vpack.c.b16 %v2474, %v2470
    %2667 = vmatprep.subr.bf16.mxu0 0
    %2668 = vmatpush1.bf16.msra.mxu0 %v1874
    %2669 = vmatprep.subr.bf16.mxu0 0
    %2670 = vmatpush1.bf16.msra.mxu0 %v1873
    %2671 = vmatprep.subr.bf16.mxu0 0
    %2672 = vmatpush1.bf16.msra.mxu0 %v1872
    %2673 = vmatprep.subr.bf16.mxu0 0
    %2674 = vmatpush1.bf16.msra.mxu0 %v1871
    %2675 = vmatprep.subr.bf16.mxu0 0
    %2676 = vmatpush1.bf16.msra.mxu0 %v1870
    %2677 = vmatprep.subr.bf16.mxu0 0
    %2678 = vmatpush1.bf16.msra.mxu0 %v1869
    %2679 = vmatprep.subr.bf16.mxu0 0
    %2680 = vmatpush1.bf16.msra.mxu0 %v1868
    %2681 = vmatprep.subr.bf16.mxu0 0
    %2682 = vmatpush1.bf16.msra.mxu0 %v1867
    %2683 = vmatprep.subr.bf16.mxu0 0
    %2684 = vmatpush2.bf16.msra.mxu0 %v1882
    %2685 = vmatprep.subr.bf16.mxu0 0
    %2686 = vmatpush2.bf16.msra.mxu0 %v1881
    %2687 = vmatprep.subr.bf16.mxu0 0
    %2688 = vmatpush2.bf16.msra.mxu0 %v1880
    %2689 = vmatprep.subr.bf16.mxu0 0
    %2690 = vmatpush2.bf16.msra.mxu0 %v1879
    %2691 = vmatprep.subr.bf16.mxu0 0
    %2692 = vmatpush2.bf16.msra.mxu0 %v1878
    %2693 = vmatprep.subr.bf16.mxu0 0
    %2694 = vmatpush2.bf16.msra.mxu0 %v1877
    %2695 = vmatprep.subr.bf16.mxu0 0
    %2696 = vmatpush2.bf16.msra.mxu0 %v1876
    %2697 = vmatprep.subr.bf16.mxu0 0
    %2698 = vmatpush2.bf16.msra.mxu0 %v1875
    %2699 = vmatprep.mubr.bf16.mxu0 %v2476
    %2700 = vmatmul.mubr.bf16.gmra.mxu0 %v2475
    %v2701 = vpop.f32.mrf.mxu0
    %v2702 = vadd.f32 %v1950, %v2701
    %v2703 = vpop.f32.mrf.mxu0
    %v2704 = vpop.f32.mrf.mxu0
    %v2705 = vadd.f32 %v1955, %v2704
    %v2706 = vpop.f32.mrf.mxu0
    %2707 = vmatprep.mubr.bf16.mxu0 %v2480
    %2708 = vmatmul.mubr.bf16.gmra.mxu0 %v2479
    %v2709 = vpop.f32.mrf.mxu0
    %v2710 = vadd.f32 %v1960, %v2709
    %v2711 = vpop.f32.mrf.mxu0
    %v2712 = vpop.f32.mrf.mxu0
    %v2713 = vadd.f32 %v1965, %v2712
    %v2714 = vpop.f32.mrf.mxu0
    %2715 = vmatprep.mubr.bf16.mxu0 %v2484
    %2716 = vmatmul.mubr.bf16.gmra.mxu0 %v2483
    %v2717 = vpop.f32.mrf.mxu0
    %v2718 = vadd.f32 %v1970, %v2717
    %v2719 = vpop.f32.mrf.mxu0
    %v2720 = vpop.f32.mrf.mxu0
    %v2721 = vadd.f32 %v1975, %v2720
    %v2722 = vpop.f32.mrf.mxu0
    %2723 = vmatprep.mubr.bf16.mxu0 %v2488
    %2724 = vmatmul.mubr.bf16.gmra.mxu0 %v2487
    %v2725 = vpop.f32.mrf.mxu0
    %v2726 = vadd.f32 %v1980, %v2725
    %v2727 = vpop.f32.mrf.mxu0
    %v2728 = vpop.f32.mrf.mxu0
    %v2729 = vadd.f32 %v1985, %v2728
    %v2730 = vpop.f32.mrf.mxu0
    %2731 = vmatprep.mubr.bf16.mxu0 %v2492
    %2732 = vmatmul.mubr.bf16.gmra.mxu0 %v2491
    %v2733 = vpop.f32.mrf.mxu0
    %v2734 = vadd.f32 %v1990, %v2733
    %v2735 = vpop.f32.mrf.mxu0
    %v2736 = vpop.f32.mrf.mxu0
    %v2737 = vadd.f32 %v1995, %v2736
    %v2738 = vpop.f32.mrf.mxu0
    %2739 = vmatprep.mubr.bf16.mxu0 %v2496
    %2740 = vmatmul.mubr.bf16.gmra.mxu0 %v2495
    %v2741 = vpop.f32.mrf.mxu0
    %v2742 = vadd.f32 %v2000, %v2741
    %v2743 = vpop.f32.mrf.mxu0
    %v2744 = vpop.f32.mrf.mxu0
    %v2745 = vadd.f32 %v2005, %v2744
    %v2746 = vpop.f32.mrf.mxu0
    %2747 = vmatprep.mubr.bf16.mxu0 %v2500
    %2748 = vmatmul.mubr.bf16.gmra.mxu0 %v2499
    %v2749 = vpop.f32.mrf.mxu0
    %v2750 = vadd.f32 %v2010, %v2749
    %v2751 = vpop.f32.mrf.mxu0
    %v2752 = vpop.f32.mrf.mxu0
    %v2753 = vadd.f32 %v2015, %v2752
    %v2754 = vpop.f32.mrf.mxu0
    %2755 = vmatprep.mubr.bf16.mxu0 %v2504
    %2756 = vmatmul.mubr.bf16.gmra.mxu0 %v2503
    %v2757 = vpop.f32.mrf.mxu0
    %v2758 = vadd.f32 %v2020, %v2757
    %v2759 = vpop.f32.mrf.mxu0
    %v2760 = vpop.f32.mrf.mxu0
    %v2761 = vadd.f32 %v2025, %v2760
    %v2762 = vpop.f32.mrf.mxu0
    %2763 = vmatprep.mubr.bf16.mxu0 %v2508
    %2764 = vmatmul.mubr.bf16.gmra.mxu0 %v2507
    %v2765 = vpop.f32.mrf.mxu0
    %v2766 = vadd.f32 %v2030, %v2765
    %v2767 = vpop.f32.mrf.mxu0
    %v2768 = vpop.f32.mrf.mxu0
    %v2769 = vadd.f32 %v2035, %v2768
    %v2770 = vpop.f32.mrf.mxu0
    %2771 = vmatprep.mubr.bf16.mxu0 %v2512
    %2772 = vmatmul.mubr.bf16.gmra.mxu0 %v2511
    %v2773 = vpop.f32.mrf.mxu0
    %v2774 = vadd.f32 %v2040, %v2773
    %v2775 = vpop.f32.mrf.mxu0
    %v2776 = vpop.f32.mrf.mxu0
    %v2777 = vadd.f32 %v2045, %v2776
    %v2778 = vpop.f32.mrf.mxu0
    %2779 = vmatprep.mubr.bf16.mxu0 %v2516
    %2780 = vmatmul.mubr.bf16.gmra.mxu0 %v2515
    %v2781 = vpop.f32.mrf.mxu0
    %v2782 = vadd.f32 %v2050, %v2781
    %v2783 = vpop.f32.mrf.mxu0
    %v2784 = vpop.f32.mrf.mxu0
    %v2785 = vadd.f32 %v2055, %v2784
    %v2786 = vpop.f32.mrf.mxu0
    %2787 = vmatprep.mubr.bf16.mxu0 %v2520
    %2788 = vmatmul.mubr.bf16.gmra.mxu0 %v2519
    %v2789 = vpop.f32.mrf.mxu0
    %v2790 = vadd.f32 %v2060, %v2789
    %v2791 = vpop.f32.mrf.mxu0
    %v2792 = vpop.f32.mrf.mxu0
    %v2793 = vadd.f32 %v2065, %v2792
    %v2794 = vpop.f32.mrf.mxu0
    %2795 = vmatprep.mubr.bf16.mxu0 %v2524
    %2796 = vmatmul.mubr.bf16.gmra.mxu0 %v2523
    %v2797 = vpop.f32.mrf.mxu0
    %v2798 = vadd.f32 %v2070, %v2797
    %v2799 = vpop.f32.mrf.mxu0
    %v2800 = vpop.f32.mrf.mxu0
    %v2801 = vadd.f32 %v2075, %v2800
    %v2802 = vpop.f32.mrf.mxu0
    %2803 = vmatprep.mubr.bf16.mxu0 %v2528
    %2804 = vmatmul.mubr.bf16.gmra.mxu0 %v2527
    %v2805 = vpop.f32.mrf.mxu0
    %v2806 = vadd.f32 %v2080, %v2805
    %v2807 = vpop.f32.mrf.mxu0
    %v2808 = vpop.f32.mrf.mxu0
    %v2809 = vadd.f32 %v2085, %v2808
    %v2810 = vpop.f32.mrf.mxu0
    %2811 = vmatprep.mubr.bf16.mxu0 %v2532
    %2812 = vmatmul.mubr.bf16.gmra.mxu0 %v2531
    %v2813 = vpop.f32.mrf.mxu0
    %v2814 = vadd.f32 %v2090, %v2813
    %v2815 = vpop.f32.mrf.mxu0
    %v2816 = vpop.f32.mrf.mxu0
    %v2817 = vadd.f32 %v2095, %v2816
    %v2818 = vpop.f32.mrf.mxu0
    %2819 = vmatprep.mubr.bf16.mxu0 %v2536
    %2820 = vmatmul.mubr.bf16.gmra.mxu0 %v2535
    %v2821 = vpop.f32.mrf.mxu0
    %v2822 = vadd.f32 %v2100, %v2821
    %v2823 = vpop.f32.mrf.mxu0
    %v2824 = vpop.f32.mrf.mxu0
    %v2825 = vadd.f32 %v2105, %v2824
    %v2826 = vpop.f32.mrf.mxu0
    %2827 = vmatprep.mubr.bf16.mxu0 %v2540
    %2828 = vmatmul.mubr.bf16.gmra.mxu0 %v2539
    %v2829 = vpop.f32.mrf.mxu0
    %v2830 = vadd.f32 %v2110, %v2829
    %v2831 = vpop.f32.mrf.mxu0
    %v2832 = vpop.f32.mrf.mxu0
    %v2833 = vadd.f32 %v2115, %v2832
    %v2834 = vpop.f32.mrf.mxu0
    %2835 = vmatprep.mubr.bf16.mxu0 %v2544
    %2836 = vmatmul.mubr.bf16.gmra.mxu0 %v2543
    %v2837 = vpop.f32.mrf.mxu0
    %v2838 = vadd.f32 %v2120, %v2837
    %v2839 = vpop.f32.mrf.mxu0
    %v2840 = vpop.f32.mrf.mxu0
    %v2841 = vadd.f32 %v2125, %v2840
    %v2842 = vpop.f32.mrf.mxu0
    %2843 = vmatprep.mubr.bf16.mxu0 %v2548
    %2844 = vmatmul.mubr.bf16.gmra.mxu0 %v2547
    %v2845 = vpop.f32.mrf.mxu0
    %v2846 = vadd.f32 %v2130, %v2845
    %v2847 = vpop.f32.mrf.mxu0
    %v2848 = vpop.f32.mrf.mxu0
    %v2849 = vadd.f32 %v2135, %v2848
    %v2850 = vpop.f32.mrf.mxu0
    %2851 = vmatprep.mubr.bf16.mxu0 %v2552
    %2852 = vmatmul.mubr.bf16.gmra.mxu0 %v2551
    %v2853 = vpop.f32.mrf.mxu0
    %v2854 = vadd.f32 %v2140, %v2853
    %v2855 = vpop.f32.mrf.mxu0
    %v2856 = vpop.f32.mrf.mxu0
    %v2857 = vadd.f32 %v2145, %v2856
    %v2858 = vpop.f32.mrf.mxu0
    %2859 = vmatprep.mubr.bf16.mxu0 %v2556
    %2860 = vmatmul.mubr.bf16.gmra.mxu0 %v2555
    %v2861 = vpop.f32.mrf.mxu0
    %v2862 = vadd.f32 %v2150, %v2861
    %v2863 = vpop.f32.mrf.mxu0
    %v2864 = vpop.f32.mrf.mxu0
    %v2865 = vadd.f32 %v2155, %v2864
    %v2866 = vpop.f32.mrf.mxu0
    %2867 = vmatprep.mubr.bf16.mxu0 %v2560
    %2868 = vmatmul.mubr.bf16.gmra.mxu0 %v2559
    %v2869 = vpop.f32.mrf.mxu0
    %v2870 = vadd.f32 %v2160, %v2869
    %v2871 = vpop.f32.mrf.mxu0
    %v2872 = vpop.f32.mrf.mxu0
    %v2873 = vadd.f32 %v2165, %v2872
    %v2874 = vpop.f32.mrf.mxu0
    %2875 = vmatprep.mubr.bf16.mxu0 %v2564
    %2876 = vmatmul.mubr.bf16.gmra.mxu0 %v2563
    %v2877 = vpop.f32.mrf.mxu0
    %v2878 = vadd.f32 %v2170, %v2877
    %v2879 = vpop.f32.mrf.mxu0
    %v2880 = vpop.f32.mrf.mxu0
    %v2881 = vadd.f32 %v2175, %v2880
    %v2882 = vpop.f32.mrf.mxu0
    %2883 = vmatprep.mubr.bf16.mxu0 %v2568
    %2884 = vmatmul.mubr.bf16.gmra.mxu0 %v2567
    %v2885 = vpop.f32.mrf.mxu0
    %v2886 = vadd.f32 %v2180, %v2885
    %v2887 = vpop.f32.mrf.mxu0
    %v2888 = vpop.f32.mrf.mxu0
    %v2889 = vadd.f32 %v2185, %v2888
    %v2890 = vpop.f32.mrf.mxu0
    %2891 = vdwg.mxu0
    %2892 = vmatprep.subr.bf16.mxu0 0
    %2893 = vmatpush1.bf16.msra.mxu0 %v1890
    %2894 = vmatprep.subr.bf16.mxu0 0
    %2895 = vmatpush1.bf16.msra.mxu0 %v1889
    %2896 = vmatprep.subr.bf16.mxu0 0
    %2897 = vmatpush1.bf16.msra.mxu0 %v1888
    %2898 = vmatprep.subr.bf16.mxu0 0
    %2899 = vmatpush1.bf16.msra.mxu0 %v1887
    %2900 = vmatprep.subr.bf16.mxu0 0
    %2901 = vmatpush1.bf16.msra.mxu0 %v1886
    %2902 = vmatprep.subr.bf16.mxu0 0
    %2903 = vmatpush1.bf16.msra.mxu0 %v1885
    %2904 = vmatprep.subr.bf16.mxu0 0
    %2905 = vmatpush1.bf16.msra.mxu0 %v1884
    %2906 = vmatprep.subr.bf16.mxu0 0
    %2907 = vmatpush1.bf16.msra.mxu0 %v1883
    %2908 = vmatprep.subr.bf16.mxu0 0
    %2909 = vmatpush2.bf16.msra.mxu0 %v1898
    %2910 = vmatprep.subr.bf16.mxu0 0
    %2911 = vmatpush2.bf16.msra.mxu0 %v1897
    %2912 = vmatprep.subr.bf16.mxu0 0
    %2913 = vmatpush2.bf16.msra.mxu0 %v1896
    %2914 = vmatprep.subr.bf16.mxu0 0
    %2915 = vmatpush2.bf16.msra.mxu0 %v1895
    %2916 = vmatprep.subr.bf16.mxu0 0
    %2917 = vmatpush2.bf16.msra.mxu0 %v1894
    %2918 = vmatprep.subr.bf16.mxu0 0
    %2919 = vmatpush2.bf16.msra.mxu0 %v1893
    %2920 = vmatprep.subr.bf16.mxu0 0
    %2921 = vmatpush2.bf16.msra.mxu0 %v1892
    %2922 = vmatprep.subr.bf16.mxu0 0
    %2923 = vmatpush2.bf16.msra.mxu0 %v1891
    %2924 = vmatprep.mubr.bf16.mxu0 %v2478
    %2925 = vmatmul.mubr.bf16.gmra.mxu0 %v2477
    %v2926 = vpop.f32.mrf.mxu0
    %v2927 = vadd.f32 %v2702, %v2926
    %v2928 = vpop.f32.mrf.mxu0
    %v2929 = vpop.f32.mrf.mxu0
    %v2930 = vadd.f32 %v2705, %v2929
    %v2931 = vpop.f32.mrf.mxu0
    %2932 = vmatprep.mubr.bf16.mxu0 %v2482
    %2933 = vmatmul.mubr.bf16.gmra.mxu0 %v2481
    %v2934 = vpop.f32.mrf.mxu0
    %v2935 = vadd.f32 %v2710, %v2934
    %v2936 = vpop.f32.mrf.mxu0
    %v2937 = vpop.f32.mrf.mxu0
    %v2938 = vadd.f32 %v2713, %v2937
    %v2939 = vpop.f32.mrf.mxu0
    %2940 = vmatprep.mubr.bf16.mxu0 %v2486
    %2941 = vmatmul.mubr.bf16.gmra.mxu0 %v2485
    %v2942 = vpop.f32.mrf.mxu0
    %v2943 = vadd.f32 %v2718, %v2942
    %v2944 = vpop.f32.mrf.mxu0
    %v2945 = vpop.f32.mrf.mxu0
    %v2946 = vadd.f32 %v2721, %v2945
    %v2947 = vpop.f32.mrf.mxu0
    %2948 = vmatprep.mubr.bf16.mxu0 %v2490
    %2949 = vmatmul.mubr.bf16.gmra.mxu0 %v2489
    %v2950 = vpop.f32.mrf.mxu0
    %v2951 = vadd.f32 %v2726, %v2950
    %v2952 = vpop.f32.mrf.mxu0
    %v2953 = vpop.f32.mrf.mxu0
    %v2954 = vadd.f32 %v2729, %v2953
    %v2955 = vpop.f32.mrf.mxu0
    %2956 = vmatprep.mubr.bf16.mxu0 %v2494
    %2957 = vmatmul.mubr.bf16.gmra.mxu0 %v2493
    %v2958 = vpop.f32.mrf.mxu0
    %v2959 = vadd.f32 %v2734, %v2958
    %v2960 = vpop.f32.mrf.mxu0
    %v2961 = vpop.f32.mrf.mxu0
    %v2962 = vadd.f32 %v2737, %v2961
    %v2963 = vpop.f32.mrf.mxu0
    %2964 = vmatprep.mubr.bf16.mxu0 %v2498
    %2965 = vmatmul.mubr.bf16.gmra.mxu0 %v2497
    %v2966 = vpop.f32.mrf.mxu0
    %v2967 = vadd.f32 %v2742, %v2966
    %v2968 = vpop.f32.mrf.mxu0
    %v2969 = vpop.f32.mrf.mxu0
    %v2970 = vadd.f32 %v2745, %v2969
    %v2971 = vpop.f32.mrf.mxu0
    %2972 = vmatprep.mubr.bf16.mxu0 %v2502
    %2973 = vmatmul.mubr.bf16.gmra.mxu0 %v2501
    %v2974 = vpop.f32.mrf.mxu0
    %v2975 = vadd.f32 %v2750, %v2974
    %v2976 = vpop.f32.mrf.mxu0
    %v2977 = vpop.f32.mrf.mxu0
    %v2978 = vadd.f32 %v2753, %v2977
    %v2979 = vpop.f32.mrf.mxu0
    %2980 = vmatprep.mubr.bf16.mxu0 %v2506
    %2981 = vmatmul.mubr.bf16.gmra.mxu0 %v2505
    %v2982 = vpop.f32.mrf.mxu0
    %v2983 = vadd.f32 %v2758, %v2982
    %v2984 = vpop.f32.mrf.mxu0
    %v2985 = vpop.f32.mrf.mxu0
    %v2986 = vadd.f32 %v2761, %v2985
    %v2987 = vpop.f32.mrf.mxu0
    %2988 = vmatprep.mubr.bf16.mxu0 %v2510
    %2989 = vmatmul.mubr.bf16.gmra.mxu0 %v2509
    %v2990 = vpop.f32.mrf.mxu0
    %v2991 = vadd.f32 %v2766, %v2990
    %v2992 = vpop.f32.mrf.mxu0
    %v2993 = vpop.f32.mrf.mxu0
    %v2994 = vadd.f32 %v2769, %v2993
    %v2995 = vpop.f32.mrf.mxu0
    %2996 = vmatprep.mubr.bf16.mxu0 %v2514
    %2997 = vmatmul.mubr.bf16.gmra.mxu0 %v2513
    %v2998 = vpop.f32.mrf.mxu0
    %v2999 = vadd.f32 %v2774, %v2998
    %v3000 = vpop.f32.mrf.mxu0
    %v3001 = vpop.f32.mrf.mxu0
    %v3002 = vadd.f32 %v2777, %v3001
    %v3003 = vpop.f32.mrf.mxu0
    %3004 = vmatprep.mubr.bf16.mxu0 %v2518
    %3005 = vmatmul.mubr.bf16.gmra.mxu0 %v2517
    %v3006 = vpop.f32.mrf.mxu0
    %v3007 = vadd.f32 %v2782, %v3006
    %v3008 = vpop.f32.mrf.mxu0
    %v3009 = vpop.f32.mrf.mxu0
    %v3010 = vadd.f32 %v2785, %v3009
    %v3011 = vpop.f32.mrf.mxu0
    %3012 = vmatprep.mubr.bf16.mxu0 %v2522
    %3013 = vmatmul.mubr.bf16.gmra.mxu0 %v2521
    %v3014 = vpop.f32.mrf.mxu0
    %v3015 = vadd.f32 %v2790, %v3014
    %v3016 = vpop.f32.mrf.mxu0
    %v3017 = vpop.f32.mrf.mxu0
    %v3018 = vadd.f32 %v2793, %v3017
    %v3019 = vpop.f32.mrf.mxu0
    %3020 = vmatprep.mubr.bf16.mxu0 %v2526
    %3021 = vmatmul.mubr.bf16.gmra.mxu0 %v2525
    %v3022 = vpop.f32.mrf.mxu0
    %v3023 = vadd.f32 %v2798, %v3022
    %v3024 = vpop.f32.mrf.mxu0
    %v3025 = vpop.f32.mrf.mxu0
    %v3026 = vadd.f32 %v2801, %v3025
    %v3027 = vpop.f32.mrf.mxu0
    %3028 = vmatprep.mubr.bf16.mxu0 %v2530
    %3029 = vmatmul.mubr.bf16.gmra.mxu0 %v2529
    %v3030 = vpop.f32.mrf.mxu0
    %v3031 = vadd.f32 %v2806, %v3030
    %v3032 = vpop.f32.mrf.mxu0
    %v3033 = vpop.f32.mrf.mxu0
    %v3034 = vadd.f32 %v2809, %v3033
    %v3035 = vpop.f32.mrf.mxu0
    %3036 = vmatprep.mubr.bf16.mxu0 %v2534
    %3037 = vmatmul.mubr.bf16.gmra.mxu0 %v2533
    %v3038 = vpop.f32.mrf.mxu0
    %v3039 = vadd.f32 %v2814, %v3038
    %v3040 = vpop.f32.mrf.mxu0
    %v3041 = vpop.f32.mrf.mxu0
    %v3042 = vadd.f32 %v2817, %v3041
    %v3043 = vpop.f32.mrf.mxu0
    %3044 = vmatprep.mubr.bf16.mxu0 %v2538
    %3045 = vmatmul.mubr.bf16.gmra.mxu0 %v2537
    %v3046 = vpop.f32.mrf.mxu0
    %v3047 = vadd.f32 %v2822, %v3046
    %v3048 = vpop.f32.mrf.mxu0
    %v3049 = vpop.f32.mrf.mxu0
    %v3050 = vadd.f32 %v2825, %v3049
    %v3051 = vpop.f32.mrf.mxu0
    %3052 = vmatprep.mubr.bf16.mxu0 %v2542
    %3053 = vmatmul.mubr.bf16.gmra.mxu0 %v2541
    %v3054 = vpop.f32.mrf.mxu0
    %v3055 = vadd.f32 %v2830, %v3054
    %v3056 = vpop.f32.mrf.mxu0
    %v3057 = vpop.f32.mrf.mxu0
    %v3058 = vadd.f32 %v2833, %v3057
    %v3059 = vpop.f32.mrf.mxu0
    %3060 = vmatprep.mubr.bf16.mxu0 %v2546
    %3061 = vmatmul.mubr.bf16.gmra.mxu0 %v2545
    %v3062 = vpop.f32.mrf.mxu0
    %v3063 = vadd.f32 %v2838, %v3062
    %v3064 = vpop.f32.mrf.mxu0
    %v3065 = vpop.f32.mrf.mxu0
    %v3066 = vadd.f32 %v2841, %v3065
    %v3067 = vpop.f32.mrf.mxu0
    %3068 = vmatprep.mubr.bf16.mxu0 %v2550
    %3069 = vmatmul.mubr.bf16.gmra.mxu0 %v2549
    %v3070 = vpop.f32.mrf.mxu0
    %v3071 = vadd.f32 %v2846, %v3070
    %v3072 = vpop.f32.mrf.mxu0
    %v3073 = vpop.f32.mrf.mxu0
    %v3074 = vadd.f32 %v2849, %v3073
    %v3075 = vpop.f32.mrf.mxu0
    %3076 = vmatprep.mubr.bf16.mxu0 %v2554
    %3077 = vmatmul.mubr.bf16.gmra.mxu0 %v2553
    %v3078 = vpop.f32.mrf.mxu0
    %v3079 = vadd.f32 %v2854, %v3078
    %v3080 = vpop.f32.mrf.mxu0
    %v3081 = vpop.f32.mrf.mxu0
    %v3082 = vadd.f32 %v2857, %v3081
    %v3083 = vpop.f32.mrf.mxu0
    %3084 = vmatprep.mubr.bf16.mxu0 %v2558
    %3085 = vmatmul.mubr.bf16.gmra.mxu0 %v2557
    %v3086 = vpop.f32.mrf.mxu0
    %v3087 = vadd.f32 %v2862, %v3086
    %v3088 = vpop.f32.mrf.mxu0
    %v3089 = vpop.f32.mrf.mxu0
    %v3090 = vadd.f32 %v2865, %v3089
    %v3091 = vpop.f32.mrf.mxu0
    %3092 = vmatprep.mubr.bf16.mxu0 %v2562
    %3093 = vmatmul.mubr.bf16.gmra.mxu0 %v2561
    %v3094 = vpop.f32.mrf.mxu0
    %v3095 = vadd.f32 %v2870, %v3094
    %v3096 = vpop.f32.mrf.mxu0
    %v3097 = vpop.f32.mrf.mxu0
    %v3098 = vadd.f32 %v2873, %v3097
    %v3099 = vpop.f32.mrf.mxu0
    %3100 = vmatprep.mubr.bf16.mxu0 %v2566
    %3101 = vmatmul.mubr.bf16.gmra.mxu0 %v2565
    %v3102 = vpop.f32.mrf.mxu0
    %v3103 = vadd.f32 %v2878, %v3102
    %v3104 = vpop.f32.mrf.mxu0
    %v3105 = vpop.f32.mrf.mxu0
    %v3106 = vadd.f32 %v2881, %v3105
    %v3107 = vpop.f32.mrf.mxu0
    %3108 = vmatprep.mubr.bf16.mxu0 %v2570
    %3109 = vmatmul.mubr.bf16.gmra.mxu0 %v2569
    %v3110 = vpop.f32.mrf.mxu0
    %v3111 = vadd.f32 %v2886, %v3110
    %v3112 = vpop.f32.mrf.mxu0
    %v3113 = vpop.f32.mrf.mxu0
    %v3114 = vadd.f32 %v2889, %v3113
    %v3115 = vpop.f32.mrf.mxu0
    %3116 = vdwg.mxu0
    %v3117 = vmax.f32 %v2927, 0.0
    %v3118 = vmax.f32 %v2930, 0.0
    %v3119 = vmax.f32 %v2935, 0.0
    %v3120 = vmax.f32 %v2938, 0.0
    %v3121 = vmax.f32 %v2943, 0.0
    %v3122 = vmax.f32 %v2946, 0.0
    %v3123 = vmax.f32 %v2951, 0.0
    %v3124 = vmax.f32 %v2954, 0.0
    %v3125 = vmax.f32 %v2959, 0.0
    %v3126 = vmax.f32 %v2962, 0.0
    %v3127 = vmax.f32 %v2967, 0.0
    %v3128 = vmax.f32 %v2970, 0.0
    %v3129 = vmax.f32 %v2975, 0.0
    %v3130 = vmax.f32 %v2978, 0.0
    %v3131 = vmax.f32 %v2983, 0.0
    %v3132 = vmax.f32 %v2986, 0.0
    %v3133 = vmax.f32 %v2991, 0.0
    %v3134 = vmax.f32 %v2994, 0.0
    %v3135 = vmax.f32 %v2999, 0.0
    %v3136 = vmax.f32 %v3002, 0.0
    %v3137 = vmax.f32 %v3007, 0.0
    %v3138 = vmax.f32 %v3010, 0.0
    %v3139 = vmax.f32 %v3015, 0.0
    %v3140 = vmax.f32 %v3018, 0.0
    %v3141 = vmax.f32 %v3023, 0.0
    %v3142 = vmax.f32 %v3026, 0.0
    %v3143 = vmax.f32 %v3031, 0.0
    %v3144 = vmax.f32 %v3034, 0.0
    %v3145 = vmax.f32 %v3039, 0.0
    %v3146 = vmax.f32 %v3042, 0.0
    %v3147 = vmax.f32 %v3047, 0.0
    %v3148 = vmax.f32 %v3050, 0.0
    %v3149 = vmax.f32 %v3055, 0.0
    %v3150 = vmax.f32 %v3058, 0.0
    %v3151 = vmax.f32 %v3063, 0.0
    %v3152 = vmax.f32 %v3066, 0.0
    %v3153 = vmax.f32 %v3071, 0.0
    %v3154 = vmax.f32 %v3074, 0.0
    %v3155 = vmax.f32 %v3079, 0.0
    %v3156 = vmax.f32 %v3082, 0.0
    %v3157 = vmax.f32 %v3087, 0.0
    %v3158 = vmax.f32 %v3090, 0.0
    %v3159 = vmax.f32 %v3095, 0.0
    %v3160 = vmax.f32 %v3098, 0.0
    %v3161 = vmax.f32 %v3103, 0.0
    %v3162 = vmax.f32 %v3106, 0.0
    %v3163 = vmax.f32 %v3111, 0.0
    %v3164 = vmax.f32 %v3114, 0.0
    %v3165 = vld [vmem:[%s5] sm:$0xff]
    %v3166 = vld [vmem:[%s5 + $0x8] sm:$0xff]
    %v3167 = vld [vmem:[%s5 + $0x10] sm:$0xff]
    %v3168 = vld [vmem:[%s5 + $0x18] sm:$0xff]
    %v3169 = vld [vmem:[%s5 + $0x20] sm:$0xff]
    %v3170 = vld [vmem:[%s5 + $0x28] sm:$0xff]
    %v3171 = vld [vmem:[%s5 + $0x30] sm:$0xff]
    %v3172 = vld [vmem:[%s5 + $0x38] sm:$0xff]
    %v3173 = vld [vmem:[%s5 + $0x40] sm:$0xff]
    %v3174 = vld [vmem:[%s5 + $0x48] sm:$0xff]
    %v3175 = vld [vmem:[%s5 + $0x50] sm:$0xff]
    %v3176 = vld [vmem:[%s5 + $0x58] sm:$0xff]
    %v3177 = vld [vmem:[%s5 + $0x60] sm:$0xff]
    %v3178 = vld [vmem:[%s5 + $0x68] sm:$0xff]
    %v3179 = vld [vmem:[%s5 + $0x70] sm:$0xff]
    %v3180 = vld [vmem:[%s5 + $0x78] sm:$0xff]
    %v3181 = vld [vmem:[%s5 + $0x80] sm:$0xff]
    %v3182 = vld [vmem:[%s5 + $0x88] sm:$0xff]
    %v3183 = vld [vmem:[%s5 + $0x90] sm:$0xff]
    %v3184 = vld [vmem:[%s5 + $0x98] sm:$0xff]
    %v3185 = vld [vmem:[%s5 + $0xa0] sm:$0xff]
    %v3186 = vld [vmem:[%s5 + $0xa8] sm:$0xff]
    %v3187 = vld [vmem:[%s5 + $0xb0] sm:$0xff]
    %v3188 = vld [vmem:[%s5 + $0xb8] sm:$0xff]
    %v3189 = vld [vmem:[%s5 + $0xc0] sm:$0xff]
    %v3190 = vld [vmem:[%s5 + $0xc8] sm:$0xff]
    %v3191 = vld [vmem:[%s5 + $0xd0] sm:$0xff]
    %v3192 = vld [vmem:[%s5 + $0xd8] sm:$0xff]
    %v3193 = vld [vmem:[%s5 + $0xe0] sm:$0xff]
    %v3194 = vld [vmem:[%s5 + $0xe8] sm:$0xff]
    %v3195 = vld [vmem:[%s5 + $0xf0] sm:$0xff]
    %v3196 = vld [vmem:[%s5 + $0xf8] sm:$0xff]
    %v3197 = vld [vmem:[%s5 + $0x100] sm:$0xff]
    %v3198 = vld [vmem:[%s5 + $0x108] sm:$0xff]
    %v3199 = vld [vmem:[%s5 + $0x110] sm:$0xff]
    %v3200 = vld [vmem:[%s5 + $0x118] sm:$0xff]
    %v3201 = vld [vmem:[%s5 + $0x120] sm:$0xff]
    %v3202 = vld [vmem:[%s5 + $0x128] sm:$0xff]
    %v3203 = vld [vmem:[%s5 + $0x130] sm:$0xff]
    %v3204 = vld [vmem:[%s5 + $0x138] sm:$0xff]
    %v3205 = vld [vmem:[%s5 + $0x140] sm:$0xff]
    %v3206 = vld [vmem:[%s5 + $0x148] sm:$0xff]
    %v3207 = vld [vmem:[%s5 + $0x150] sm:$0xff]
    %v3208 = vld [vmem:[%s5 + $0x158] sm:$0xff]
    %v3209 = vld [vmem:[%s5 + $0x160] sm:$0xff]
    %v3210 = vld [vmem:[%s5 + $0x168] sm:$0xff]
    %v3211 = vld [vmem:[%s5 + $0x170] sm:$0xff]
    %v3212 = vld [vmem:[%s5 + $0x178] sm:$0xff]
    %3214 = vset.pattern.permute.xlu0 0
    %3215 = vperm.xlu0 %3214, %v3165
    %v3216 = vpop.permute.xlu0 %3215
    %3219 = vset.pattern.permute.xlu0 0
    %3220 = vperm.xlu0 %3219, %v3166
    %v3221 = vpop.permute.xlu0 %3220
    %3224 = vset.pattern.permute.xlu0 0
    %3225 = vperm.xlu0 %3224, %v3167
    %v3226 = vpop.permute.xlu0 %3225
    %3229 = vset.pattern.permute.xlu0 0
    %3230 = vperm.xlu0 %3229, %v3168
    %v3231 = vpop.permute.xlu0 %3230
    %3234 = vset.pattern.permute.xlu0 0
    %3235 = vperm.xlu0 %3234, %v3169
    %v3236 = vpop.permute.xlu0 %3235
    %3239 = vset.pattern.permute.xlu0 0
    %3240 = vperm.xlu0 %3239, %v3170
    %v3241 = vpop.permute.xlu0 %3240
    %3244 = vset.pattern.permute.xlu0 0
    %3245 = vperm.xlu0 %3244, %v3171
    %v3246 = vpop.permute.xlu0 %3245
    %3249 = vset.pattern.permute.xlu0 0
    %3250 = vperm.xlu0 %3249, %v3172
    %v3251 = vpop.permute.xlu0 %3250
    %3254 = vset.pattern.permute.xlu0 0
    %3255 = vperm.xlu0 %3254, %v3173
    %v3256 = vpop.permute.xlu0 %3255
    %3259 = vset.pattern.permute.xlu0 0
    %3260 = vperm.xlu0 %3259, %v3174
    %v3261 = vpop.permute.xlu0 %3260
    %3264 = vset.pattern.permute.xlu0 0
    %3265 = vperm.xlu0 %3264, %v3175
    %v3266 = vpop.permute.xlu0 %3265
    %3269 = vset.pattern.permute.xlu0 0
    %3270 = vperm.xlu0 %3269, %v3176
    %v3271 = vpop.permute.xlu0 %3270
    %3274 = vset.pattern.permute.xlu0 0
    %3275 = vperm.xlu0 %3274, %v3177
    %v3276 = vpop.permute.xlu0 %3275
    %3279 = vset.pattern.permute.xlu0 0
    %3280 = vperm.xlu0 %3279, %v3178
    %v3281 = vpop.permute.xlu0 %3280
    %3284 = vset.pattern.permute.xlu0 0
    %3285 = vperm.xlu0 %3284, %v3179
    %v3286 = vpop.permute.xlu0 %3285
    %3289 = vset.pattern.permute.xlu0 0
    %3290 = vperm.xlu0 %3289, %v3180
    %v3291 = vpop.permute.xlu0 %3290
    %3294 = vset.pattern.permute.xlu0 0
    %3295 = vperm.xlu0 %3294, %v3181
    %v3296 = vpop.permute.xlu0 %3295
    %3299 = vset.pattern.permute.xlu0 0
    %3300 = vperm.xlu0 %3299, %v3182
    %v3301 = vpop.permute.xlu0 %3300
    %3304 = vset.pattern.permute.xlu0 0
    %3305 = vperm.xlu0 %3304, %v3183
    %v3306 = vpop.permute.xlu0 %3305
    %3309 = vset.pattern.permute.xlu0 0
    %3310 = vperm.xlu0 %3309, %v3184
    %v3311 = vpop.permute.xlu0 %3310
    %3314 = vset.pattern.permute.xlu0 0
    %3315 = vperm.xlu0 %3314, %v3185
    %v3316 = vpop.permute.xlu0 %3315
    %3319 = vset.pattern.permute.xlu0 0
    %3320 = vperm.xlu0 %3319, %v3186
    %v3321 = vpop.permute.xlu0 %3320
    %3324 = vset.pattern.permute.xlu0 0
    %3325 = vperm.xlu0 %3324, %v3187
    %v3326 = vpop.permute.xlu0 %3325
    %3329 = vset.pattern.permute.xlu0 0
    %3330 = vperm.xlu0 %3329, %v3188
    %v3331 = vpop.permute.xlu0 %3330
    %3334 = vset.pattern.permute.xlu0 0
    %3335 = vperm.xlu0 %3334, %v3189
    %v3336 = vpop.permute.xlu0 %3335
    %3339 = vset.pattern.permute.xlu0 0
    %3340 = vperm.xlu0 %3339, %v3190
    %v3341 = vpop.permute.xlu0 %3340
    %3344 = vset.pattern.permute.xlu0 0
    %3345 = vperm.xlu0 %3344, %v3191
    %v3346 = vpop.permute.xlu0 %3345
    %3349 = vset.pattern.permute.xlu0 0
    %3350 = vperm.xlu0 %3349, %v3192
    %v3351 = vpop.permute.xlu0 %3350
    %3354 = vset.pattern.permute.xlu0 0
    %3355 = vperm.xlu0 %3354, %v3193
    %v3356 = vpop.permute.xlu0 %3355
    %3359 = vset.pattern.permute.xlu0 0
    %3360 = vperm.xlu0 %3359, %v3194
    %v3361 = vpop.permute.xlu0 %3360
    %3364 = vset.pattern.permute.xlu0 0
    %3365 = vperm.xlu0 %3364, %v3195
    %v3366 = vpop.permute.xlu0 %3365
    %3369 = vset.pattern.permute.xlu0 0
    %3370 = vperm.xlu0 %3369, %v3196
    %v3371 = vpop.permute.xlu0 %3370
    %3374 = vset.pattern.permute.xlu0 0
    %3375 = vperm.xlu0 %3374, %v3197
    %v3376 = vpop.permute.xlu0 %3375
    %3379 = vset.pattern.permute.xlu0 0
    %3380 = vperm.xlu0 %3379, %v3198
    %v3381 = vpop.permute.xlu0 %3380
    %3384 = vset.pattern.permute.xlu0 0
    %3385 = vperm.xlu0 %3384, %v3199
    %v3386 = vpop.permute.xlu0 %3385
    %3389 = vset.pattern.permute.xlu0 0
    %3390 = vperm.xlu0 %3389, %v3200
    %v3391 = vpop.permute.xlu0 %3390
    %3394 = vset.pattern.permute.xlu0 0
    %3395 = vperm.xlu0 %3394, %v3201
    %v3396 = vpop.permute.xlu0 %3395
    %3399 = vset.pattern.permute.xlu0 0
    %3400 = vperm.xlu0 %3399, %v3202
    %v3401 = vpop.permute.xlu0 %3400
    %3404 = vset.pattern.permute.xlu0 0
    %3405 = vperm.xlu0 %3404, %v3203
    %v3406 = vpop.permute.xlu0 %3405
    %3409 = vset.pattern.permute.xlu0 0
    %3410 = vperm.xlu0 %3409, %v3204
    %v3411 = vpop.permute.xlu0 %3410
    %3414 = vset.pattern.permute.xlu0 0
    %3415 = vperm.xlu0 %3414, %v3205
    %v3416 = vpop.permute.xlu0 %3415
    %3419 = vset.pattern.permute.xlu0 0
    %3420 = vperm.xlu0 %3419, %v3206
    %v3421 = vpop.permute.xlu0 %3420
    %3424 = vset.pattern.permute.xlu0 0
    %3425 = vperm.xlu0 %3424, %v3207
    %v3426 = vpop.permute.xlu0 %3425
    %3429 = vset.pattern.permute.xlu0 0
    %3430 = vperm.xlu0 %3429, %v3208
    %v3431 = vpop.permute.xlu0 %3430
    %3434 = vset.pattern.permute.xlu0 0
    %3435 = vperm.xlu0 %3434, %v3209
    %v3436 = vpop.permute.xlu0 %3435
    %3439 = vset.pattern.permute.xlu0 0
    %3440 = vperm.xlu0 %3439, %v3210
    %v3441 = vpop.permute.xlu0 %3440
    %3444 = vset.pattern.permute.xlu0 0
    %3445 = vperm.xlu0 %3444, %v3211
    %v3446 = vpop.permute.xlu0 %3445
    %3449 = vset.pattern.permute.xlu0 0
    %3450 = vperm.xlu0 %3449, %v3212
    %v3451 = vpop.permute.xlu0 %3450
    %v3453 = vmul.f32 %v3117, %v3216
    %v3454 = vmul.f32 %v3118, %v3221
    %v3455 = vmul.f32 %v3119, %v3226
    %v3456 = vmul.f32 %v3120, %v3231
    %v3457 = vmul.f32 %v3121, %v3236
    %v3458 = vmul.f32 %v3122, %v3241
    %v3459 = vmul.f32 %v3123, %v3246
    %v3460 = vmul.f32 %v3124, %v3251
    %v3461 = vmul.f32 %v3125, %v3256
    %v3462 = vmul.f32 %v3126, %v3261
    %v3463 = vmul.f32 %v3127, %v3266
    %v3464 = vmul.f32 %v3128, %v3271
    %v3465 = vmul.f32 %v3129, %v3276
    %v3466 = vmul.f32 %v3130, %v3281
    %v3467 = vmul.f32 %v3131, %v3286
    %v3468 = vmul.f32 %v3132, %v3291
    %v3469 = vmul.f32 %v3133, %v3296
    %v3470 = vmul.f32 %v3134, %v3301
    %v3471 = vmul.f32 %v3135, %v3306
    %v3472 = vmul.f32 %v3136, %v3311
    %v3473 = vmul.f32 %v3137, %v3316
    %v3474 = vmul.f32 %v3138, %v3321
    %v3475 = vmul.f32 %v3139, %v3326
    %v3476 = vmul.f32 %v3140, %v3331
    %v3477 = vmul.f32 %v3141, %v3336
    %v3478 = vmul.f32 %v3142, %v3341
    %v3479 = vmul.f32 %v3143, %v3346
    %v3480 = vmul.f32 %v3144, %v3351
    %v3481 = vmul.f32 %v3145, %v3356
    %v3482 = vmul.f32 %v3146, %v3361
    %v3483 = vmul.f32 %v3147, %v3366
    %v3484 = vmul.f32 %v3148, %v3371
    %v3485 = vmul.f32 %v3149, %v3376
    %v3486 = vmul.f32 %v3150, %v3381
    %v3487 = vmul.f32 %v3151, %v3386
    %v3488 = vmul.f32 %v3152, %v3391
    %v3489 = vmul.f32 %v3153, %v3396
    %v3490 = vmul.f32 %v3154, %v3401
    %v3491 = vmul.f32 %v3155, %v3406
    %v3492 = vmul.f32 %v3156, %v3411
    %v3493 = vmul.f32 %v3157, %v3416
    %v3494 = vmul.f32 %v3158, %v3421
    %v3495 = vmul.f32 %v3159, %v3426
    %v3496 = vmul.f32 %v3160, %v3431
    %v3497 = vmul.f32 %v3161, %v3436
    %v3498 = vmul.f32 %v3162, %v3441
    %v3499 = vmul.f32 %v3163, %v3446
    %v3500 = vmul.f32 %v3164, %v3451
    %vm3501 = vcmask 64512
    %v3502 = vsel %vm3501, %v3453, 0.0
    %v3503 = vsel %vm3501, %v3454, 0.0
    %v3504 = vadd.f32 %v3502, %v3503
    %v3505 = vsel %vm3501, %v3455, 0.0
    %v3506 = vadd.f32 %v3504, %v3505
    %v3507 = vsel %vm3501, %v3456, 0.0
    %v3508 = vadd.f32 %v3506, %v3507
    %v3509 = vsel %vm3501, %v3457, 0.0
    %v3510 = vadd.f32 %v3508, %v3509
    %v3511 = vsel %vm3501, %v3458, 0.0
    %v3512 = vadd.f32 %v3510, %v3511
    %v3513 = vsel %vm3501, %v3459, 0.0
    %v3514 = vadd.f32 %v3512, %v3513
    %v3515 = vsel %vm3501, %v3460, 0.0
    %v3516 = vadd.f32 %v3514, %v3515
    %v3517 = vsel %vm3501, %v3461, 0.0
    %v3518 = vadd.f32 %v3516, %v3517
    %v3519 = vsel %vm3501, %v3462, 0.0
    %v3520 = vadd.f32 %v3518, %v3519
    %v3521 = vsel %vm3501, %v3463, 0.0
    %v3522 = vadd.f32 %v3520, %v3521
    %v3523 = vsel %vm3501, %v3464, 0.0
    %v3524 = vadd.f32 %v3522, %v3523
    %v3525 = vsel %vm3501, %v3465, 0.0
    %v3526 = vadd.f32 %v3524, %v3525
    %v3527 = vsel %vm3501, %v3466, 0.0
    %v3528 = vadd.f32 %v3526, %v3527
    %v3529 = vsel %vm3501, %v3467, 0.0
    %v3530 = vadd.f32 %v3528, %v3529
    %v3531 = vsel %vm3501, %v3468, 0.0
    %v3532 = vadd.f32 %v3530, %v3531
    %v3533 = vsel %vm3501, %v3469, 0.0
    %v3534 = vadd.f32 %v3532, %v3533
    %v3535 = vsel %vm3501, %v3470, 0.0
    %v3536 = vadd.f32 %v3534, %v3535
    %v3537 = vsel %vm3501, %v3471, 0.0
    %v3538 = vadd.f32 %v3536, %v3537
    %v3539 = vsel %vm3501, %v3472, 0.0
    %v3540 = vadd.f32 %v3538, %v3539
    %v3541 = vsel %vm3501, %v3473, 0.0
    %v3542 = vadd.f32 %v3540, %v3541
    %v3543 = vsel %vm3501, %v3474, 0.0
    %v3544 = vadd.f32 %v3542, %v3543
    %v3545 = vsel %vm3501, %v3475, 0.0
    %v3546 = vadd.f32 %v3544, %v3545
    %v3547 = vsel %vm3501, %v3476, 0.0
    %v3548 = vadd.f32 %v3546, %v3547
    %v3549 = vsel %vm3501, %v3477, 0.0
    %v3550 = vadd.f32 %v3548, %v3549
    %v3551 = vsel %vm3501, %v3478, 0.0
    %v3552 = vadd.f32 %v3550, %v3551
    %v3553 = vsel %vm3501, %v3479, 0.0
    %v3554 = vadd.f32 %v3552, %v3553
    %v3555 = vsel %vm3501, %v3480, 0.0
    %v3556 = vadd.f32 %v3554, %v3555
    %v3557 = vsel %vm3501, %v3481, 0.0
    %v3558 = vadd.f32 %v3556, %v3557
    %v3559 = vsel %vm3501, %v3482, 0.0
    %v3560 = vadd.f32 %v3558, %v3559
    %v3561 = vsel %vm3501, %v3483, 0.0
    %v3562 = vadd.f32 %v3560, %v3561
    %v3563 = vsel %vm3501, %v3484, 0.0
    %v3564 = vadd.f32 %v3562, %v3563
    %v3565 = vsel %vm3501, %v3485, 0.0
    %v3566 = vadd.f32 %v3564, %v3565
    %v3567 = vsel %vm3501, %v3486, 0.0
    %v3568 = vadd.f32 %v3566, %v3567
    %v3569 = vsel %vm3501, %v3487, 0.0
    %v3570 = vadd.f32 %v3568, %v3569
    %v3571 = vsel %vm3501, %v3488, 0.0
    %v3572 = vadd.f32 %v3570, %v3571
    %v3573 = vsel %vm3501, %v3489, 0.0
    %v3574 = vadd.f32 %v3572, %v3573
    %v3575 = vsel %vm3501, %v3490, 0.0
    %v3576 = vadd.f32 %v3574, %v3575
    %v3577 = vsel %vm3501, %v3491, 0.0
    %v3578 = vadd.f32 %v3576, %v3577
    %v3579 = vsel %vm3501, %v3492, 0.0
    %v3580 = vadd.f32 %v3578, %v3579
    %v3581 = vsel %vm3501, %v3493, 0.0
    %v3582 = vadd.f32 %v3580, %v3581
    %v3583 = vsel %vm3501, %v3494, 0.0
    %v3584 = vadd.f32 %v3582, %v3583
    %v3585 = vsel %vm3501, %v3495, 0.0
    %v3586 = vadd.f32 %v3584, %v3585
    %v3587 = vsel %vm3501, %v3496, 0.0
    %v3588 = vadd.f32 %v3586, %v3587
    %v3589 = vsel %vm3501, %v3497, 0.0
    %v3590 = vadd.f32 %v3588, %v3589
    %v3591 = vsel %vm3501, %v3498, 0.0
    %v3592 = vadd.f32 %v3590, %v3591
    %v3593 = vsel %vm3501, %v3499, 0.0
    %v3594 = vadd.f32 %v3592, %v3593
    %v3595 = vsel %vm3501, %v3500, 0.0
    %v3596 = vadd.f32 %v3594, %v3595
    %v3597 = vrot.slane %v3596, 4
    %v3598 = vadd.f32 %v3596, %v3597
    %v3599 = vrot.slane %v3598, 2
    %v3600 = vadd.f32 %v3598, %v3599
    %v3601 = vrot.slane %v3600, 1
    %v3602 = vadd.f32 %v3600, %v3601
    %v3603 = vld [vmem:[#allocation2] sm:$0x1]
    %3605 = vset.pattern.permute.xlu0 0
    %3606 = vperm.xlu0 %3605, %v3603
    %v3607 = vpop.permute.xlu0 %3606
    %v3609 = vlaneseq
    %v3610 = vshrl.u32 %v3609, 7
    %v3611 = vsub.s32 0, %v3610
    %v3612 = vrot.slane %v3607, %v3611
    %v3613 = vadd.f32 %v3602, %v3612
    %v3614 = vtanh.pop %v3613
    %v3615 = vmul.f32 %v3614, 2.0
    %vm3616 = vcmask 57344
    %3617 = vst.msk [vmem:[#allocation3] sm:$0x1] %vm3616, %v3615
    // Predicated region
    $region30: #{tpu_custom_call.1} parent=1 // pred_check
      _
    $region31: #{tpu_custom_call.1} parent=1 // pred_check_branch
      %3619 = sbr.rel (0) target = $region33
    $region32: #{tpu_custom_call.1} parent=1 // pred_region
      %s3621 = ssub.s32 16, 16
      %3622 = vsyncadd [#allocation4], %s3621
      %s3624 = sshll.u32 [#allocation3], 4
      %s3625 = int_to_ptr.vmem [resolvable:$true] %s3624
      %3627 = dma.vmem_to_hbm [thread:$0]  %s3625, 16, %s7, [#allocation4]
    $region33: #{tpu_custom_call.1} parent=1 // pred_fallthru
      _
    // Predicated region
    $region34: #{tpu_custom_call.1} parent=1 // pred_check
      _
    $region35: #{tpu_custom_call.1} parent=1 // pred_check_branch
      %3629 = sbr.rel (0) target = $region37
    $region36: #{tpu_custom_call.1} parent=1 // pred_region
      %3630 = dma.done [#allocation4], 16
    $region37: #{tpu_custom_call.1} parent=1 // pred_fallthru
      _
    %3631 = vsyncpa [#allocation4], 1

</llo_original>
